<compile_context>
chip_gen: v7x
topology: tpu7x:2x2x1
jax: 0.10.0
libtpu: 0.0.40
codegen_flags: <defaults>
</compile_context>

<pallas_src>
import jax
import jax.numpy as jnp
from jax import lax
from jax.experimental import pallas as pl
from jax.experimental.pallas import tpu as pltpu

MULTIPLIER = 1.0  # HypernetworkModule.multiplier


# --------------------------- device / tiling helpers -------------------------

def _device_info():
    """(vmem_capacity_bytes, multi_tensorcore, mxu_is_256_wide) for local TPU."""
    vmem_cap = 128 * 1024 * 1024
    try:
        vmem_cap = int(pltpu.get_tpu_info().vmem_capacity_bytes)
    except Exception:
        pass
    kind = ""
    try:
        kind = jax.devices()[0].device_kind.lower()
    except Exception:
        pass
    multi_tc = any(s in kind for s in ("v4", "v5p", "7x", "v7"))
    mxu_256 = any(s in kind for s in ("v6", "7x", "v7"))
    return vmem_cap, multi_tc, mxu_256


def _sublane(dtype):
    itemsize = jnp.dtype(dtype).itemsize
    if itemsize >= 4:
        return 8
    if itemsize == 2:
        return 16
    return 32


def _pick_row_tile(m, dtype, multi_tc, tm_max=512):
    """Row tile rounded to the dtype's sublane multiple.  Force >=2 grid steps
    only on multi-TC chips (megacore sharding); single-TC chips run small M in
    one step to avoid per-step overhead."""
    sub = _sublane(dtype)
    tm_max = max(sub, (tm_max // sub) * sub)
    m_up = -(-m // sub) * sub
    if multi_tc and m_up > sub:
        half = max(sub, ((m_up // 2) // sub) * sub)
        return min(tm_max, half)
    return min(m_up, tm_max)


def _pick_hidden_chunk(hidden, mxu_256, max_chunk):
    """Hidden-dim chunk.  Prefer multiples of 256 on 256-wide MXUs (v6e/v7x),
    fall back to 128-multiples (v5e).  No chunking if nothing divides evenly."""
    if hidden <= max_chunk:
        return hidden
    steps = (256, 128) if mxu_256 else (128,)
    for step in steps:
        hi = max_chunk - (max_chunk % step)
        for th in range(hi, step - 1, -step):
            if hidden % th == 0:
                return th
    return hidden


# ------------------------------- kernels -------------------------------------

def _make_resident_kernel(th, n_chunks, multiplier, use_acc):
    """Weights fully VMEM-resident; optional in-kernel hidden chunking."""

    def tail(x, y, b2_ref, o_ref):
        y = y + b2_ref[...].astype(jnp.float32)
        o_ref[...] = (x.astype(jnp.float32) + y * multiplier).astype(o_ref.dtype)

    if not use_acc:
        def kernel(x_ref, w1_ref, b1_ref, w2_ref, b2_ref, o_ref):
            x = x_ref[...]
            xm = x.astype(w1_ref.dtype)                       # MXU-native dtype
            h = jnp.dot(xm, w1_ref[...], preferred_element_type=jnp.float32)
            h = (h + b1_ref[...].astype(jnp.float32)).astype(w2_ref.dtype)
            y = jnp.dot(h, w2_ref[...], preferred_element_type=jnp.float32)
            tail(x, y, b2_ref, o_ref)
        return kernel

    def kernel(x_ref, w1_ref, b1_ref, w2_ref, b2_ref, o_ref, acc_ref):
        x = x_ref[...]
        xm = x.astype(w1_ref.dtype)
        acc_ref[...] = jnp.zeros_like(acc_ref)

        def body(c, carry):
            start = pl.multiple_of(c * th, th)
            h = jnp.dot(xm, w1_ref[:, pl.ds(start, th)],
                        preferred_element_type=jnp.float32)
            h = (h + b1_ref[:, pl.ds(start, th)].astype(jnp.float32)
                 ).astype(w2_ref.dtype)
            acc_ref[...] += jnp.dot(h, w2_ref[pl.ds(start, th), :],
                                    preferred_element_type=jnp.float32)
            return carry

        # Capped unroll: LLO scheduling visibility without vreg-spill blowup.
        lax.fori_loop(0, n_chunks, body, 0, unroll=min(n_chunks, 4))
        tail(x, acc_ref[...], b2_ref, o_ref)

    return kernel


def _make_streamed_kernel(multiplier):
    """Weights streamed per hidden chunk over a second (reduction) grid axis."""

    def kernel(x_ref, w1_ref, b1_ref, w2_ref, b2_ref, o_ref, acc_ref):
        k = pl.program_id(1)

        @pl.when(k == 0)
        def _():
            acc_ref[...] = jnp.zeros_like(acc_ref)

        x = x_ref[...]
        xm = x.astype(w1_ref.dtype)
        h = jnp.dot(xm, w1_ref[...], preferred_element_type=jnp.float32)
        h = (h + b1_ref[...].astype(jnp.float32)).astype(w2_ref.dtype)
        acc_ref[...] += jnp.dot(h, w2_ref[...],
                                preferred_element_type=jnp.float32)

        @pl.when(k == pl.num_programs(1) - 1)
        def _():
            y = acc_ref[...] + b2_ref[...].astype(jnp.float32)
            o_ref[...] = (x.astype(jnp.float32) + y * multiplier
                          ).astype(o_ref.dtype)

    return kernel


# ------------------------------- wrappers -------------------------------------

def prepare_hypernet_params(w1, b1, w2, b2, compute_dtype=jnp.bfloat16):
    """One-time (load-time) repack of PyTorch nn.Linear params into kernel
    layout: weights transposed to (in, out), biases as (1, n) rows.  Weights are
    repacked to bf16 by default (MXU-native on v5e/v6e/v7x, halves weight
    VMEM/HBM traffic); pass compute_dtype=None to keep the original dtype."""
    hidden, dim = w1.shape
    assert w2.shape == (dim, hidden)
    w1t = jnp.asarray(w1).T                                   # (dim, hidden)
    w2t = jnp.asarray(w2).T                                   # (hidden, dim)
    if compute_dtype is not None:
        w1t = w1t.astype(compute_dtype)
        w2t = w2t.astype(compute_dtype)
    return (w1t, jnp.asarray(b1).reshape(1, hidden),
            w2t, jnp.asarray(b2).reshape(1, dim))


def hypernetwork_module_forward(x, params, *, tm_max=512, hidden_chunk=None,
                                multiplier=MULTIPLIER, force_stream=False):
    """x: (..., dim). params from prepare_hypernet_params."""
    w1t, b1r, w2t, b2r = params
    dim, hidden = w1t.shape
    assert w2t.shape == (hidden, dim)
    assert b1r.shape == (1, hidden) and b2r.shape == (1, dim)
    assert x.shape[-1] == dim

    orig_shape = x.shape
    x2d = x.reshape(-1, dim)
    m = x2d.shape[0]

    vmem_cap, multi_tc, mxu_256 = _device_info()
    vmem_limit = int(vmem_cap * 0.8)          # leave compiler-scratch headroom

    tm = _pick_row_tile(m, x.dtype, multi_tc, tm_max)
    grid_m = pl.cdiv(m, tm)                   # partial last block masked by Pallas

    weight_bytes = sum(int(a.size) * a.dtype.itemsize
                       for a in (w1t, b1r, w2t, b2r))
    # Stream weight chunks from HBM only when even single-buffered resident
    # weights would eat most of the VMEM budget (large dim/hidden, esp. v7x).
    stream = force_stream or (weight_bytes > 0.6 * vmem_limit)

    if hidden_chunk is None:
        hidden_chunk = 512 if (stream or vmem_cap <= 64 * 1024 * 1024) else 2048
    th = _pick_hidden_chunk(hidden, mxu_256, hidden_chunk)
    n_chunks = hidden // th

    wt_passes = grid_m if stream else 1
    cost = pl.CostEstimate(
        flops=int(4 * m * dim * hidden),
        transcendentals=0,
        bytes_accessed=int(2 * m * dim * jnp.dtype(x.dtype).itemsize
                           + wt_passes * weight_bytes))

    def run(buffered):
        def const(shape, grid_ndim):
            kwargs = {}
            if buffered:
                # Grid-invariant block: single-buffer it (half the VMEM, no
                # overlap lost since the block index never changes).
                kwargs["pipeline_mode"] = pl.Buffered(1)
            if grid_ndim == 1:
                return pl.BlockSpec(shape, lambda i: (0,) * len(shape), **kwargs)
            return pl.BlockSpec(shape, lambda i, k: (0,) * len(shape), **kwargs)

        if stream:
            kernel = _make_streamed_kernel(multiplier)
            grid_spec = pltpu.PrefetchScalarGridSpec(
                num_scalar_prefetch=0,
                grid=(grid_m, n_chunks),
                in_specs=[
                    pl.BlockSpec((tm, dim), lambda i, k: (i, 0)),
                    pl.BlockSpec((dim, th), lambda i, k: (0, k)),
                    pl.BlockSpec((1, th), lambda i, k: (0, k)),
                    pl.BlockSpec((th, dim), lambda i, k: (k, 0)),
                    const((1, dim), 2),
                ],
                out_specs=pl.BlockSpec((tm, dim), lambda i, k: (i, 0)),
                scratch_shapes=[pltpu.VMEM((tm, dim), jnp.float32)],
            )
            dims = ("parallel", "arbitrary")
        else:
            use_acc = n_chunks > 1
            kernel = _make_resident_kernel(th, n_chunks, multiplier, use_acc)
            grid_spec = pltpu.PrefetchScalarGridSpec(
                num_scalar_prefetch=0,
                grid=(grid_m,),
                in_specs=[
                    pl.BlockSpec((tm, dim), lambda i: (i, 0)),
                    const((dim, hidden), 1),
                    const((1, hidden), 1),
                    const((hidden, dim), 1),
                    const((1, dim), 1),
                ],
                out_specs=pl.BlockSpec((tm, dim), lambda i: (i, 0)),
                scratch_shapes=(tuple([pltpu.VMEM((tm, dim), jnp.float32)])
                                if use_acc else ()),
            )
            dims = ("parallel",)

        return pl.pallas_call(
            kernel,
            out_shape=jax.ShapeDtypeStruct((m, dim), x.dtype),
            grid_spec=grid_spec,
            compiler_params=pltpu.CompilerParams(
                dimension_semantics=dims,
                vmem_limit_bytes=vmem_limit,
            ),
            cost_estimate=cost,
        )(x2d, w1t, b1r, w2t, b2r)

    try:
        out2d = run(True)
    except Exception:
        # Fallback if this JAX build rejects pipeline_mode=pl.Buffered(1).
        out2d = run(False)

    return out2d.reshape(orig_shape)


# --------------------------------- demo ---------------------------------------

if __name__ == "__main__":
    key = jax.random.PRNGKey(0)
    k_x, k_w1, k_w2 = jax.random.split(key, 3)

    batch, seq, dim = 2, 64, 128
    hidden = 2 * dim  # default multipliers (1, 2, 1)

    x = jax.random.normal(k_x, (batch, seq, dim), dtype=jnp.float32)

    # Deterministic init matching the module: weight ~ N(0, 0.01), bias = 0.
    w1 = 0.01 * jax.random.normal(k_w1, (hidden, dim), dtype=jnp.float32)
    b1 = jnp.zeros((hidden,), dtype=jnp.float32)
    w2 = 0.01 * jax.random.normal(k_w2, (dim, hidden), dtype=jnp.float32)
    b2 = jnp.zeros((dim,), dtype=jnp.float32)

    def reference(x_in, w1_, b1_, w2_, b2_):
        xf = x_in.astype(jnp.float32)
        y = (xf @ w1_.T + b1_) @ w2_.T + b2_
        return (xf + y * MULTIPLIER).astype(x_in.dtype)

    ref = reference(x, w1, b1, w2, b2)

    # 1) exact f32 path (weights kept f32), resident weights, unchunked
    params_f32 = prepare_hypernet_params(w1, b1, w2, b2, compute_dtype=None)
    out = jax.block_until_ready(hypernetwork_module_forward(x, params_f32))
    assert out.shape == x.shape and out.dtype == x.dtype
    assert jnp.allclose(out, ref, atol=1e-5, rtol=1e-5)

    # 2) in-kernel hidden-chunking path (resident weights, f32 accumulator)
    out_c = jax.block_until_ready(
        hypernetwork_module_forward(x, params_f32, hidden_chunk=128))
    assert jnp.allclose(out_c, ref, atol=1e-5, rtol=1e-5)

    # 3) streamed-weight path (2-D grid, reduction axis last), forced for test
    out_s = jax.block_until_ready(
        hypernetwork_module_forward(x, params_f32, hidden_chunk=128,
                                    force_stream=True))
    assert jnp.allclose(out_s, ref, atol=1e-5, rtol=1e-5)

    # 4) default prepare(): weights repacked to bf16 (MXU-native), f32 x/residual
    params_bf16w = prepare_hypernet_params(w1, b1, w2, b2)
    out_bw = jax.block_until_ready(hypernetwork_module_forward(x, params_bf16w))
    assert out_bw.dtype == x.dtype
    assert jnp.allclose(out_bw, ref, atol=1e-2, rtol=1e-2)

    # 5) fully bf16 activations + bf16 weights
    xb = x.astype(jnp.bfloat16)
    out_b = jax.block_until_ready(hypernetwork_module_forward(xb, params_bf16w))
    ref_b = reference(xb, w1, b1, w2, b2)
    assert out_b.dtype == jnp.bfloat16
    assert jnp.allclose(out_b.astype(jnp.float32), ref_b.astype(jnp.float32),
                        atol=5e-2, rtol=5e-2)

    # 6) ragged M (partial last block handled in-kernel; no pad/slice passes)
    x_odd = jax.random.normal(k_x, (3, 7, dim), dtype=jnp.float32)
    out_odd = jax.block_until_ready(hypernetwork_module_forward(x_odd, params_f32))
    ref_odd = reference(x_odd, w1, b1, w2, b2)
    assert jnp.allclose(out_odd, ref_odd, atol=1e-5, rtol=1e-5)

    print("KERNEL_OK")
</pallas_src>

<mosaic_0001>
module attributes {stable_mosaic.version = 11 : i64} {
  func.func @kernel(%arg0: i32, %arg1: memref<128x128xf32, #tpu.memory_space<vmem>>, %arg2: memref<128x256xf32, #tpu.memory_space<vmem>>, %arg3: memref<1x256xf32, #tpu.memory_space<vmem>>, %arg4: memref<256x128xf32, #tpu.memory_space<vmem>>, %arg5: memref<1x128xf32, #tpu.memory_space<vmem>>, %arg6: memref<128x128xf32, #tpu.memory_space<vmem>>) attributes {dimension_semantics = [#tpu.dimension_semantics<parallel>], iteration_bounds = array<i64: 1>, scalar_prefetch = 0 : i64, scratch_operands = 0 : i64, tpu.core_type = #tpu.core_type<tc>, window_params = [{transform_indices = @transform_0, window_bounds = array<i64: 128, 128>}, {pipeline_mode = #tpu.pipeline_mode<synchronous>, transform_indices = @transform_1, window_bounds = array<i64: 128, 256>}, {pipeline_mode = #tpu.pipeline_mode<synchronous>, transform_indices = @transform_2, window_bounds = array<i64: 1, 256>}, {pipeline_mode = #tpu.pipeline_mode<synchronous>, transform_indices = @transform_3, window_bounds = array<i64: 256, 128>}, {pipeline_mode = #tpu.pipeline_mode<synchronous>, transform_indices = @transform_4, window_bounds = array<i64: 1, 128>}, {transform_indices = @transform_5, window_bounds = array<i64: 128, 128>}]} {
    %c0 = arith.constant 0 : index
    %c0_0 = arith.constant 0 : index
    %0 = vector.load %arg1[%c0, %c0_0] : memref<128x128xf32, #tpu.memory_space<vmem>>, vector<128x128xf32>
    %c0_1 = arith.constant 0 : index
    %c0_2 = arith.constant 0 : index
    %1 = vector.load %arg2[%c0_1, %c0_2] : memref<128x256xf32, #tpu.memory_space<vmem>>, vector<128x256xf32>
    %cst = arith.constant dense<0.000000e+00> : vector<128x256xf32>
    %2 = tpu.matmul %0, %1, %cst {dimension_numbers = #tpu.dot_dimension_numbers<[1], [0], [0], [1], [0, 0, 1, 1], [], []>} : vector<128x128xf32>, vector<128x256xf32>, vector<128x256xf32> -> vector<128x256xf32>
    %c0_3 = arith.constant 0 : index
    %c0_4 = arith.constant 0 : index
    %3 = vector.load %arg3[%c0_3, %c0_4] : memref<1x256xf32, #tpu.memory_space<vmem>>, vector<1x256xf32>
    %4 = vector.broadcast %3 : vector<1x256xf32> to vector<128x256xf32>
    %5 = arith.addf %2, %4 : vector<128x256xf32>
    %c0_5 = arith.constant 0 : index
    %c0_6 = arith.constant 0 : index
    %6 = vector.load %arg4[%c0_5, %c0_6] : memref<256x128xf32, #tpu.memory_space<vmem>>, vector<256x128xf32>
    %cst_7 = arith.constant dense<0.000000e+00> : vector<128x128xf32>
    %7 = tpu.matmul %5, %6, %cst_7 {dimension_numbers = #tpu.dot_dimension_numbers<[1], [0], [0], [1], [0, 0, 1, 1], [], []>} : vector<128x256xf32>, vector<256x128xf32>, vector<128x128xf32> -> vector<128x128xf32>
    %c0_8 = arith.constant 0 : index
    %c0_9 = arith.constant 0 : index
    %8 = vector.load %arg5[%c0_8, %c0_9] : memref<1x128xf32, #tpu.memory_space<vmem>>, vector<1x128xf32>
    %9 = vector.broadcast %8 : vector<1x128xf32> to vector<128x128xf32>
    %10 = arith.addf %7, %9 : vector<128x128xf32>
    %cst_10 = arith.constant 1.000000e+00 : f32
    %11 = vector.broadcast %cst_10 : f32 to vector<128x128xf32>
    %12 = arith.mulf %10, %11 : vector<128x128xf32>
    %13 = arith.addf %0, %12 : vector<128x128xf32>
    %c0_11 = arith.constant 0 : index
    %c0_12 = arith.constant 0 : index
    %14 = vector.load %arg6[%c0_11, %c0_12] : memref<128x128xf32, #tpu.memory_space<vmem>>, vector<128x128xf32>
    tpu.vector_store %arg6[%c0_11, %c0_12], %13 {strides = array<i32>} : memref<128x128xf32, #tpu.memory_space<vmem>>, vector<128x128xf32>,
    return
  }
  func.func @transform_0(%arg0: i32) -> (i32, i32) {
    %c0_i32 = arith.constant 0 : i32
    %c0_i32_0 = arith.constant 0 : i32
    return %arg0, %c0_i32 : i32, i32
  }
  func.func @transform_1(%arg0: i32) -> (i32, i32) {
    %c0_i32 = arith.constant 0 : i32
    %c0_i32_0 = arith.constant 0 : i32
    %c0_i32_1 = arith.constant 0 : i32
    return %c0_i32, %c0_i32_0 : i32, i32
  }
  func.func @transform_2(%arg0: i32) -> (i32, i32) {
    %c0_i32 = arith.constant 0 : i32
    %c0_i32_0 = arith.constant 0 : i32
    %c0_i32_1 = arith.constant 0 : i32
    return %c0_i32, %c0_i32_0 : i32, i32
  }
  func.func @transform_3(%arg0: i32) -> (i32, i32) {
    %c0_i32 = arith.constant 0 : i32
    %c0_i32_0 = arith.constant 0 : i32
    %c0_i32_1 = arith.constant 0 : i32
    return %c0_i32, %c0_i32_0 : i32, i32
  }
  func.func @transform_4(%arg0: i32) -> (i32, i32) {
    %c0_i32 = arith.constant 0 : i32
    %c0_i32_0 = arith.constant 0 : i32
    %c0_i32_1 = arith.constant 0 : i32
    return %c0_i32, %c0_i32_0 : i32, i32
  }
  func.func @transform_5(%arg0: i32) -> (i32, i32) {
    %c0_i32 = arith.constant 0 : i32
    %c0_i32_0 = arith.constant 0 : i32
    return %arg0, %c0_i32 : i32, i32
  }
}

module attributes {stable_mosaic.version = 11 : i64} {
  func.func @kernel(%arg0: i32, %arg1: memref<128x128xf32, #tpu.memory_space<vmem>>, %arg2: memref<128x256xf32, #tpu.memory_space<vmem>>, %arg3: memref<1x256xf32, #tpu.memory_space<vmem>>, %arg4: memref<256x128xf32, #tpu.memory_space<vmem>>, %arg5: memref<1x128xf32, #tpu.memory_space<vmem>>, %arg6: memref<128x128xf32, #tpu.memory_space<vmem>>) attributes {dimension_semantics = [#tpu.dimension_semantics<parallel>], iteration_bounds = array<i64: 1>, scalar_prefetch = 0 : i64, scratch_operands = 0 : i64, tpu.core_type = #tpu.core_type<tc>, window_params = [{transform_indices = @transform_0, window_bounds = array<i64: 128, 128>}, {pipeline_mode = #tpu.pipeline_mode<synchronous>, transform_indices = @transform_1, window_bounds = array<i64: 128, 256>}, {pipeline_mode = #tpu.pipeline_mode<synchronous>, transform_indices = @transform_2, window_bounds = array<i64: 1, 256>}, {pipeline_mode = #tpu.pipeline_mode<synchronous>, transform_indices = @transform_3, window_bounds = array<i64: 256, 128>}, {pipeline_mode = #tpu.pipeline_mode<synchronous>, transform_indices = @transform_4, window_bounds = array<i64: 1, 128>}, {transform_indices = @transform_5, window_bounds = array<i64: 128, 128>}]} {
    %c0 = arith.constant 0 : index
    %c0_0 = arith.constant 0 : index
    %0 = vector.load %arg1[%c0, %c0_0] : memref<128x128xf32, #tpu.memory_space<vmem>>, vector<128x128xf32>
    %c0_1 = arith.constant 0 : index
    %c0_2 = arith.constant 0 : index
    %1 = vector.load %arg2[%c0_1, %c0_2] : memref<128x256xf32, #tpu.memory_space<vmem>>, vector<128x256xf32>
    %cst = arith.constant dense<0.000000e+00> : vector<128x256xf32>
    %2 = tpu.matmul %0, %1, %cst {dimension_numbers = #tpu.dot_dimension_numbers<[1], [0], [0], [1], [0, 0, 1, 1], [], []>} : vector<128x128xf32>, vector<128x256xf32>, vector<128x256xf32> -> vector<128x256xf32>
    %c0_3 = arith.constant 0 : index
    %c0_4 = arith.constant 0 : index
    %3 = vector.load %arg3[%c0_3, %c0_4] : memref<1x256xf32, #tpu.memory_space<vmem>>, vector<1x256xf32>
    %4 = vector.broadcast %3 : vector<1x256xf32> to vector<128x256xf32>
    %5 = arith.addf %2, %4 : vector<128x256xf32>
    %c0_5 = arith.constant 0 : index
    %c0_6 = arith.constant 0 : index
    %6 = vector.load %arg4[%c0_5, %c0_6] : memref<256x128xf32, #tpu.memory_space<vmem>>, vector<256x128xf32>
    %cst_7 = arith.constant dense<0.000000e+00> : vector<128x128xf32>
    %7 = tpu.matmul %5, %6, %cst_7 {dimension_numbers = #tpu.dot_dimension_numbers<[1], [0], [0], [1], [0, 0, 1, 1], [], []>} : vector<128x256xf32>, vector<256x128xf32>, vector<128x128xf32> -> vector<128x128xf32>
    %c0_8 = arith.constant 0 : index
    %c0_9 = arith.constant 0 : index
    %8 = vector.load %arg5[%c0_8, %c0_9] : memref<1x128xf32, #tpu.memory_space<vmem>>, vector<1x128xf32>
    %9 = vector.broadcast %8 : vector<1x128xf32> to vector<128x128xf32>
    %10 = arith.addf %7, %9 : vector<128x128xf32>
    %cst_10 = arith.constant 1.000000e+00 : f32
    %11 = vector.broadcast %cst_10 : f32 to vector<128x128xf32>
    %12 = arith.mulf %10, %11 : vector<128x128xf32>
    %13 = arith.addf %0, %12 : vector<128x128xf32>
    %c0_11 = arith.constant 0 : index
    %c0_12 = arith.constant 0 : index
    %14 = vector.load %arg6[%c0_11, %c0_12] : memref<128x128xf32, #tpu.memory_space<vmem>>, vector<128x128xf32>
    tpu.vector_store %arg6[%c0_11, %c0_12], %13 {strides = array<i32>} : memref<128x128xf32, #tpu.memory_space<vmem>>, vector<128x128xf32>,
    return
  }
  func.func @transform_0(%arg0: i32) -> (i32, i32) {
    %c0_i32 = arith.constant 0 : i32
    %c0_i32_0 = arith.constant 0 : i32
    return %arg0, %c0_i32 : i32, i32
  }
  func.func @transform_1(%arg0: i32) -> (i32, i32) {
    %c0_i32 = arith.constant 0 : i32
    %c0_i32_0 = arith.constant 0 : i32
    %c0_i32_1 = arith.constant 0 : i32
    return %c0_i32, %c0_i32_0 : i32, i32
  }
  func.func @transform_2(%arg0: i32) -> (i32, i32) {
    %c0_i32 = arith.constant 0 : i32
    %c0_i32_0 = arith.constant 0 : i32
    %c0_i32_1 = arith.constant 0 : i32
    return %c0_i32, %c0_i32_0 : i32, i32
  }
  func.func @transform_3(%arg0: i32) -> (i32, i32) {
    %c0_i32 = arith.constant 0 : i32
    %c0_i32_0 = arith.constant 0 : i32
    %c0_i32_1 = arith.constant 0 : i32
    return %c0_i32, %c0_i32_0 : i32, i32
  }
  func.func @transform_4(%arg0: i32) -> (i32, i32) {
    %c0_i32 = arith.constant 0 : i32
    %c0_i32_0 = arith.constant 0 : i32
    %c0_i32_1 = arith.constant 0 : i32
    return %c0_i32, %c0_i32_0 : i32, i32
  }
  func.func @transform_5(%arg0: i32) -> (i32, i32) {
    %c0_i32 = arith.constant 0 : i32
    %c0_i32_0 = arith.constant 0 : i32
    return %arg0, %c0_i32 : i32, i32
  }
}

</mosaic_0001>

<llo_original>
// kernel: tpu_custom_call.1
$region0: #{tpu_custom_call.1}
  #allocation0 [shape = 'u32[]', space=smem, size = 0x4, offset = 0x4, fixed_abs, tag = 'smem constant byte address 0x4 - core index']
  #allocation1 [shape = 'u32[144,128]{1,0:T(1,128)}', space=vmem, size = 0x12000, scoped, tag = 'internal scratch']
  %s0 = inlined_call_operand.hbm [shape: f32[128,128], index: 0, kind: input, shape index: {}]
  %s1 = inlined_call_operand.hbm [shape: f32[128,256], index: 1, kind: input, shape index: {}]
  %s2 = inlined_call_operand.hbm [shape: f32[1,256], index: 2, kind: input, shape index: {}]
  %s3 = inlined_call_operand.hbm [shape: f32[256,128], index: 3, kind: input, shape index: {}]
  %s4 = inlined_call_operand.hbm [shape: f32[1,128], index: 4, kind: input, shape index: {}]
  %s5 = inlined_call_operand.hbm [shape: f32[128,128], index: 5, kind: output, shape index: {}]
  %s6 = sld [smem:[#allocation0]]
  $region50: #{tpu_custom_call.1} parent=0
    _
  %s8 = ssub.s32 1, %s6
  %s9 = scalar_select 0, %s8, %s6
  $region1: #{tpu_custom_call.1} parent=0
    #allocation2 [shape = 'u8[65536]{0}', space=vmem, size = 0x10000, scoped, tag = 'input window, operand 0, single buffered']
    #allocation3 [shape = 's32[1]{0}', space=sflag, size = 0x4, scoped, tag = 'scoped memory for tpu_custom_call.1']
    #allocation4 [shape = 's32[1]{0}', space=sflag, size = 0x4, scoped, tag = 'scoped memory for tpu_custom_call.1']
    #allocation5 [shape = 'u8[131072]{0}', space=vmem, size = 0x20000, scoped, tag = 'input window, operand 1, single buffered']
    #allocation6 [shape = 's32[1]{0}', space=sflag, size = 0x4, scoped, tag = 'scoped memory for tpu_custom_call.1']
    #allocation7 [shape = 'u8[1024]{0}', space=vmem, size = 0x400, scoped, tag = 'input window, operand 2, single buffered']
    #allocation8 [shape = 'u8[131072]{0}', space=vmem, size = 0x20000, scoped, tag = 'input window, operand 3, single buffered']
    #allocation9 [shape = 's32[1]{0}', space=sflag, size = 0x4, scoped, tag = 'scoped memory for tpu_custom_call.1']
    #allocation10 [shape = 'u8[512]{0}', space=vmem, size = 0x400, scoped, tag = 'input window, operand 4, single buffered']
    #allocation11 [shape = 'u8[65536]{0}', space=vmem, size = 0x10000, scoped, tag = 'output window, operand 0, single buffered']
    %10 = vsyncpa [#allocation3], 0
    %11 = vsyncpa [#allocation6], 0
    %12 = vsyncpa [#allocation9], 0
    %13 = vsyncpa [#allocation4], 0
    // Predicated region
    $region2: #{tpu_custom_call.1} parent=1 // pred_check
      _
    $region3: #{tpu_custom_call.1} parent=1 // pred_check_branch
      %15 = sbr.rel (0) target = $region5
    $region4: #{tpu_custom_call.1} parent=1 // pred_region
      %s17 = ssub.s32 2048, 2048
      %18 = vsyncadd [#allocation3], %s17
      %s19 = sshll.u32 [#allocation2], 4
      %s20 = int_to_ptr.vmem [resolvable:$true] %s19
      %25 = dma.hbm_to_vmem [thread:$0]  %s0, 2048, %s20, [#allocation3], 128, 128, 8
    $region5: #{tpu_custom_call.1} parent=1 // pred_fallthru
      _
    // Predicated region
    $region6: #{tpu_custom_call.1} parent=1 // pred_check
      _
    $region7: #{tpu_custom_call.1} parent=1 // pred_check_branch
      %27 = sbr.rel (0) target = $region9
    $region8: #{tpu_custom_call.1} parent=1 // pred_region
      %s29 = ssub.s32 4096, 4096
      %30 = vsyncadd [#allocation6], %s29
      %s31 = sshll.u32 [#allocation5], 4
      %s32 = int_to_ptr.vmem [resolvable:$true] %s31
      %37 = dma.hbm_to_vmem [thread:$0]  %s1, 4096, %s32, [#allocation6], 256, 256, 16
    $region9: #{tpu_custom_call.1} parent=1 // pred_fallthru
      _
    // Predicated region
    $region10: #{tpu_custom_call.1} parent=1 // pred_check
      _
    $region11: #{tpu_custom_call.1} parent=1 // pred_check_branch
      %39 = sbr.rel (0) target = $region13
    $region12: #{tpu_custom_call.1} parent=1 // pred_region
      %s41 = ssub.s32 32, 32
      %42 = vsyncadd [#allocation6], %s41
      %s44 = sshll.u32 [#allocation7], 4
      %s45 = int_to_ptr.vmem [resolvable:$true] %s44
      %47 = dma.hbm_to_vmem [thread:$0]  %s2, 32, %s45, [#allocation6]
    $region13: #{tpu_custom_call.1} parent=1 // pred_fallthru
      _
    // Predicated region
    $region14: #{tpu_custom_call.1} parent=1 // pred_check
      _
    $region15: #{tpu_custom_call.1} parent=1 // pred_check_branch
      %49 = sbr.rel (0) target = $region17
    $region16: #{tpu_custom_call.1} parent=1 // pred_region
      %s51 = ssub.s32 4096, 4096
      %52 = vsyncadd [#allocation9], %s51
      %s53 = sshll.u32 [#allocation8], 4
      %s54 = int_to_ptr.vmem [resolvable:$true] %s53
      %59 = dma.hbm_to_vmem [thread:$0]  %s3, 4096, %s54, [#allocation9], 128, 128, 8
    $region17: #{tpu_custom_call.1} parent=1 // pred_fallthru
      _
    // Predicated region
    $region18: #{tpu_custom_call.1} parent=1 // pred_check
      _
    $region19: #{tpu_custom_call.1} parent=1 // pred_check_branch
      %61 = sbr.rel (0) target = $region21
    $region20: #{tpu_custom_call.1} parent=1 // pred_region
      %s63 = ssub.s32 16, 16
      %64 = vsyncadd [#allocation9], %s63
      %s66 = sshll.u32 [#allocation10], 4
      %s67 = int_to_ptr.vmem [resolvable:$true] %s66
      %69 = dma.hbm_to_vmem [thread:$0]  %s4, 16, %s67, [#allocation9]
    $region21: #{tpu_custom_call.1} parent=1 // pred_fallthru
      _
    // Predicated region
    $region22: #{tpu_custom_call.1} parent=1 // pred_check
      _
    $region23: #{tpu_custom_call.1} parent=1 // pred_check_branch
      %71 = sbr.rel (0) target = $region25
    $region24: #{tpu_custom_call.1} parent=1 // pred_region
      %72 = dma.done [#allocation3], 2048
    $region25: #{tpu_custom_call.1} parent=1 // pred_fallthru
      _
    // Predicated region
    $region26: #{tpu_custom_call.1} parent=1 // pred_check
      _
    $region27: #{tpu_custom_call.1} parent=1 // pred_check_branch
      %74 = sbr.rel (0) target = $region29
    $region28: #{tpu_custom_call.1} parent=1 // pred_region
      %75 = dma.done [#allocation6], 4096
    $region29: #{tpu_custom_call.1} parent=1 // pred_fallthru
      _
    // Predicated region
    $region30: #{tpu_custom_call.1} parent=1 // pred_check
      _
    $region31: #{tpu_custom_call.1} parent=1 // pred_check_branch
      %77 = sbr.rel (0) target = $region33
    $region32: #{tpu_custom_call.1} parent=1 // pred_region
      %78 = dma.done [#allocation6], 32
    $region33: #{tpu_custom_call.1} parent=1 // pred_fallthru
      _
    // Predicated region
    $region34: #{tpu_custom_call.1} parent=1 // pred_check
      _
    $region35: #{tpu_custom_call.1} parent=1 // pred_check_branch
      %80 = sbr.rel (0) target = $region37
    $region36: #{tpu_custom_call.1} parent=1 // pred_region
      %81 = dma.done [#allocation9], 4096
    $region37: #{tpu_custom_call.1} parent=1 // pred_fallthru
      _
    // Predicated region
    $region38: #{tpu_custom_call.1} parent=1 // pred_check
      _
    $region39: #{tpu_custom_call.1} parent=1 // pred_check_branch
      %83 = sbr.rel (0) target = $region41
    $region40: #{tpu_custom_call.1} parent=1 // pred_region
      %84 = dma.done [#allocation9], 16
    $region41: #{tpu_custom_call.1} parent=1 // pred_fallthru
      _
    %v85 = vld [vmem:[#allocation2] sm:$0xff]
    %v86 = vld [vmem:[#allocation2 + $0x8] sm:$0xff]
    %v87 = vld [vmem:[#allocation2 + $0x10] sm:$0xff]
    %v88 = vld [vmem:[#allocation2 + $0x18] sm:$0xff]
    %v89 = vld [vmem:[#allocation2 + $0x20] sm:$0xff]
    %v90 = vld [vmem:[#allocation2 + $0x28] sm:$0xff]
    %v91 = vld [vmem:[#allocation2 + $0x30] sm:$0xff]
    %v92 = vld [vmem:[#allocation2 + $0x38] sm:$0xff]
    %v93 = vld [vmem:[#allocation2 + $0x40] sm:$0xff]
    %v94 = vld [vmem:[#allocation2 + $0x48] sm:$0xff]
    %v95 = vld [vmem:[#allocation2 + $0x50] sm:$0xff]
    %v96 = vld [vmem:[#allocation2 + $0x58] sm:$0xff]
    %v97 = vld [vmem:[#allocation2 + $0x60] sm:$0xff]
    %v98 = vld [vmem:[#allocation2 + $0x68] sm:$0xff]
    %v99 = vld [vmem:[#allocation2 + $0x70] sm:$0xff]
    %v100 = vld [vmem:[#allocation2 + $0x78] sm:$0xff]
    %v101 = vld [vmem:[#allocation5] sm:$0xff]
    %v102 = vld [vmem:[#allocation5 + $0x8] sm:$0xff]
    %v103 = vld [vmem:[#allocation5 + $0x10] sm:$0xff]
    %v104 = vld [vmem:[#allocation5 + $0x18] sm:$0xff]
    %v105 = vld [vmem:[#allocation5 + $0x20] sm:$0xff]
    %v106 = vld [vmem:[#allocation5 + $0x28] sm:$0xff]
    %v107 = vld [vmem:[#allocation5 + $0x30] sm:$0xff]
    %v108 = vld [vmem:[#allocation5 + $0x38] sm:$0xff]
    %v109 = vld [vmem:[#allocation5 + $0x40] sm:$0xff]
    %v110 = vld [vmem:[#allocation5 + $0x48] sm:$0xff]
    %v111 = vld [vmem:[#allocation5 + $0x50] sm:$0xff]
    %v112 = vld [vmem:[#allocation5 + $0x58] sm:$0xff]
    %v113 = vld [vmem:[#allocation5 + $0x60] sm:$0xff]
    %v114 = vld [vmem:[#allocation5 + $0x68] sm:$0xff]
    %v115 = vld [vmem:[#allocation5 + $0x70] sm:$0xff]
    %v116 = vld [vmem:[#allocation5 + $0x78] sm:$0xff]
    %v117 = vld [vmem:[#allocation5 + $0x80] sm:$0xff]
    %v118 = vld [vmem:[#allocation5 + $0x88] sm:$0xff]
    %v119 = vld [vmem:[#allocation5 + $0x90] sm:$0xff]
    %v120 = vld [vmem:[#allocation5 + $0x98] sm:$0xff]
    %v121 = vld [vmem:[#allocation5 + $0xa0] sm:$0xff]
    %v122 = vld [vmem:[#allocation5 + $0xa8] sm:$0xff]
    %v123 = vld [vmem:[#allocation5 + $0xb0] sm:$0xff]
    %v124 = vld [vmem:[#allocation5 + $0xb8] sm:$0xff]
    %v125 = vld [vmem:[#allocation5 + $0xc0] sm:$0xff]
    %v126 = vld [vmem:[#allocation5 + $0xc8] sm:$0xff]
    %v127 = vld [vmem:[#allocation5 + $0xd0] sm:$0xff]
    %v128 = vld [vmem:[#allocation5 + $0xd8] sm:$0xff]
    %v129 = vld [vmem:[#allocation5 + $0xe0] sm:$0xff]
    %v130 = vld [vmem:[#allocation5 + $0xe8] sm:$0xff]
    %v131 = vld [vmem:[#allocation5 + $0xf0] sm:$0xff]
    %v132 = vld [vmem:[#allocation5 + $0xf8] sm:$0xff]
    %v133 = vld [vmem:[#allocation7] sm:$0x3]
    %v135 = vlaneseq
    %v136 = vshrl.u32 %v135, 7
    %v137 = vsub.s32 0, %v136
    %v138 = vrot.slane %v133, %v137
    %v139 = vlaneseq
    %v140 = vshrl.u32 %v139, 7
    %v141 = vsub.s32 1, %v140
    %v142 = vrot.slane %v133, %v141
    %145 = vmatprep.subr.mxu0 %v102
    %146 = vmatpush1.msra.mxu0 %v101
    %147 = vmatprep.subr.mxu0 %v104
    %148 = vmatpush1.msra.mxu0 %v103
    %149 = vmatprep.subr.mxu0 %v106
    %150 = vmatpush1.msra.mxu0 %v105
    %151 = vmatprep.subr.mxu0 %v108
    %152 = vmatpush1.msra.mxu0 %v107
    %153 = vmatprep.subr.mxu0 %v110
    %154 = vmatpush1.msra.mxu0 %v109
    %155 = vmatprep.subr.mxu0 %v112
    %156 = vmatpush1.msra.mxu0 %v111
    %157 = vmatprep.subr.mxu0 %v114
    %158 = vmatpush1.msra.mxu0 %v113
    %159 = vmatprep.subr.mxu0 %v116
    %160 = vmatpush1.msra.mxu0 %v115
    %161 = vmatprep.subr.mxu0 %v118
    %162 = vmatpush1.msra.mxu0 %v117
    %163 = vmatprep.subr.mxu0 %v120
    %164 = vmatpush1.msra.mxu0 %v119
    %165 = vmatprep.subr.mxu0 %v122
    %166 = vmatpush1.msra.mxu0 %v121
    %167 = vmatprep.subr.mxu0 %v124
    %168 = vmatpush1.msra.mxu0 %v123
    %169 = vmatprep.subr.mxu0 %v126
    %170 = vmatpush1.msra.mxu0 %v125
    %171 = vmatprep.subr.mxu0 %v128
    %172 = vmatpush1.msra.mxu0 %v127
    %173 = vmatprep.subr.mxu0 %v130
    %174 = vmatpush1.msra.mxu0 %v129
    %175 = vmatprep.subr.mxu0 %v132
    %176 = vmatpush1.msra.mxu0 %v131
    %177 = vmatprep.subr.mxu0 0.0
    %178 = vmatpush1.msra.mxu0 0.0
    %179 = vmatprep.subr.mxu0 0.0
    %180 = vmatpush1.msra.mxu0 0.0
    %181 = vmatprep.subr.mxu0 0.0
    %182 = vmatpush1.msra.mxu0 0.0
    %183 = vmatprep.subr.mxu0 0.0
    %184 = vmatpush1.msra.mxu0 0.0
    %185 = vmatprep.subr.mxu0 0.0
    %186 = vmatpush1.msra.mxu0 0.0
    %187 = vmatprep.subr.mxu0 0.0
    %188 = vmatpush1.msra.mxu0 0.0
    %189 = vmatprep.subr.mxu0 0.0
    %190 = vmatpush1.msra.mxu0 0.0
    %191 = vmatprep.subr.mxu0 0.0
    %192 = vmatpush1.msra.mxu0 0.0
    %193 = vmatprep.subr.mxu0 0.0
    %194 = vmatpush1.msra.mxu0 0.0
    %195 = vmatprep.subr.mxu0 0.0
    %196 = vmatpush1.msra.mxu0 0.0
    %197 = vmatprep.subr.mxu0 0.0
    %198 = vmatpush1.msra.mxu0 0.0
    %199 = vmatprep.subr.mxu0 0.0
    %200 = vmatpush1.msra.mxu0 0.0
    %201 = vmatprep.subr.mxu0 0.0
    %202 = vmatpush1.msra.mxu0 0.0
    %203 = vmatprep.subr.mxu0 0.0
    %204 = vmatpush1.msra.mxu0 0.0
    %205 = vmatprep.subr.mxu0 0.0
    %206 = vmatpush1.msra.mxu0 0.0
    %207 = vmatprep.subr.mxu0 0.0
    %208 = vmatpush1.msra.mxu0 0.0
    %209 = vmatprep.mubr.f32.mxu0 0.0
    %210 = vmatmul.mubr.f32.gmra.mrb[0].mxu0 %v85
    %v211 = vpop.f32.mrb[0].mxu0
    %v212 = vadd.f32 %v138, %v211
    %v213 = vpop.f32.mrb[0].mxu0
    %v214 = vadd.f32 %v142, %v213
    %215 = vmatprep.mubr.f32.mxu0 0.0
    %216 = vmatmul.mubr.f32.gmra.mrb[0].mxu0 %v86
    %v217 = vpop.f32.mrb[0].mxu0
    %v218 = vadd.f32 %v138, %v217
    %v219 = vpop.f32.mrb[0].mxu0
    %v220 = vadd.f32 %v142, %v219
    %221 = vmatprep.mubr.f32.mxu0 0.0
    %222 = vmatmul.mubr.f32.gmra.mrb[0].mxu0 %v87
    %v223 = vpop.f32.mrb[0].mxu0
    %v224 = vadd.f32 %v138, %v223
    %v225 = vpop.f32.mrb[0].mxu0
    %v226 = vadd.f32 %v142, %v225
    %227 = vmatprep.mubr.f32.mxu0 0.0
    %228 = vmatmul.mubr.f32.gmra.mrb[0].mxu0 %v88
    %v229 = vpop.f32.mrb[0].mxu0
    %v230 = vadd.f32 %v138, %v229
    %v231 = vpop.f32.mrb[0].mxu0
    %v232 = vadd.f32 %v142, %v231
    %233 = vmatprep.mubr.f32.mxu0 0.0
    %234 = vmatmul.mubr.f32.gmra.mrb[0].mxu0 %v89
    %v235 = vpop.f32.mrb[0].mxu0
    %v236 = vadd.f32 %v138, %v235
    %v237 = vpop.f32.mrb[0].mxu0
    %v238 = vadd.f32 %v142, %v237
    %239 = vmatprep.mubr.f32.mxu0 0.0
    %240 = vmatmul.mubr.f32.gmra.mrb[0].mxu0 %v90
    %v241 = vpop.f32.mrb[0].mxu0
    %v242 = vadd.f32 %v138, %v241
    %v243 = vpop.f32.mrb[0].mxu0
    %v244 = vadd.f32 %v142, %v243
    %245 = vmatprep.mubr.f32.mxu0 0.0
    %246 = vmatmul.mubr.f32.gmra.mrb[0].mxu0 %v91
    %v247 = vpop.f32.mrb[0].mxu0
    %v248 = vadd.f32 %v138, %v247
    %v249 = vpop.f32.mrb[0].mxu0
    %v250 = vadd.f32 %v142, %v249
    %251 = vmatprep.mubr.f32.mxu0 0.0
    %252 = vmatmul.mubr.f32.gmra.mrb[0].mxu0 %v92
    %v253 = vpop.f32.mrb[0].mxu0
    %v254 = vadd.f32 %v138, %v253
    %v255 = vpop.f32.mrb[0].mxu0
    %v256 = vadd.f32 %v142, %v255
    %257 = vmatprep.mubr.f32.mxu0 0.0
    %258 = vmatmul.mubr.f32.gmra.mrb[0].mxu0 %v93
    %v259 = vpop.f32.mrb[0].mxu0
    %v260 = vadd.f32 %v138, %v259
    %v261 = vpop.f32.mrb[0].mxu0
    %v262 = vadd.f32 %v142, %v261
    %263 = vmatprep.mubr.f32.mxu0 0.0
    %264 = vmatmul.mubr.f32.gmra.mrb[0].mxu0 %v94
    %v265 = vpop.f32.mrb[0].mxu0
    %v266 = vadd.f32 %v138, %v265
    %v267 = vpop.f32.mrb[0].mxu0
    %v268 = vadd.f32 %v142, %v267
    %269 = vmatprep.mubr.f32.mxu0 0.0
    %270 = vmatmul.mubr.f32.gmra.mrb[0].mxu0 %v95
    %v271 = vpop.f32.mrb[0].mxu0
    %v272 = vadd.f32 %v138, %v271
    %v273 = vpop.f32.mrb[0].mxu0
    %v274 = vadd.f32 %v142, %v273
    %275 = vmatprep.mubr.f32.mxu0 0.0
    %276 = vmatmul.mubr.f32.gmra.mrb[0].mxu0 %v96
    %v277 = vpop.f32.mrb[0].mxu0
    %v278 = vadd.f32 %v138, %v277
    %v279 = vpop.f32.mrb[0].mxu0
    %v280 = vadd.f32 %v142, %v279
    %281 = vmatprep.mubr.f32.mxu0 0.0
    %282 = vmatmul.mubr.f32.gmra.mrb[0].mxu0 %v97
    %v283 = vpop.f32.mrb[0].mxu0
    %v284 = vadd.f32 %v138, %v283
    %v285 = vpop.f32.mrb[0].mxu0
    %v286 = vadd.f32 %v142, %v285
    %287 = vmatprep.mubr.f32.mxu0 0.0
    %288 = vmatmul.mubr.f32.gmra.mrb[0].mxu0 %v98
    %v289 = vpop.f32.mrb[0].mxu0
    %v290 = vadd.f32 %v138, %v289
    %v291 = vpop.f32.mrb[0].mxu0
    %v292 = vadd.f32 %v142, %v291
    %293 = vmatprep.mubr.f32.mxu0 0.0
    %294 = vmatmul.mubr.f32.gmra.mrb[0].mxu0 %v99
    %v295 = vpop.f32.mrb[0].mxu0
    %v296 = vadd.f32 %v138, %v295
    %v297 = vpop.f32.mrb[0].mxu0
    %v298 = vadd.f32 %v142, %v297
    %299 = vmatprep.mubr.f32.mxu0 0.0
    %300 = vmatmul.mubr.f32.gmra.mrb[0].mxu0 %v100
    %v301 = vpop.f32.mrb[0].mxu0
    %v302 = vadd.f32 %v138, %v301
    %v303 = vpop.f32.mrb[0].mxu0
    %v304 = vadd.f32 %v142, %v303
    %305 = vdwg.mxu0
    %v306 = vld [vmem:[#allocation8] sm:$0xff]
    %v307 = vld [vmem:[#allocation8 + $0x8] sm:$0xff]
    %v308 = vld [vmem:[#allocation8 + $0x10] sm:$0xff]
    %v309 = vld [vmem:[#allocation8 + $0x18] sm:$0xff]
    %v310 = vld [vmem:[#allocation8 + $0x20] sm:$0xff]
    %v311 = vld [vmem:[#allocation8 + $0x28] sm:$0xff]
    %v312 = vld [vmem:[#allocation8 + $0x30] sm:$0xff]
    %v313 = vld [vmem:[#allocation8 + $0x38] sm:$0xff]
    %v314 = vld [vmem:[#allocation8 + $0x40] sm:$0xff]
    %v315 = vld [vmem:[#allocation8 + $0x48] sm:$0xff]
    %v316 = vld [vmem:[#allocation8 + $0x50] sm:$0xff]
    %v317 = vld [vmem:[#allocation8 + $0x58] sm:$0xff]
    %v318 = vld [vmem:[#allocation8 + $0x60] sm:$0xff]
    %v319 = vld [vmem:[#allocation8 + $0x68] sm:$0xff]
    %v320 = vld [vmem:[#allocation8 + $0x70] sm:$0xff]
    %v321 = vld [vmem:[#allocation8 + $0x78] sm:$0xff]
    %v322 = vld [vmem:[#allocation8 + $0x80] sm:$0xff]
    %v323 = vld [vmem:[#allocation8 + $0x88] sm:$0xff]
    %v324 = vld [vmem:[#allocation8 + $0x90] sm:$0xff]
    %v325 = vld [vmem:[#allocation8 + $0x98] sm:$0xff]
    %v326 = vld [vmem:[#allocation8 + $0xa0] sm:$0xff]
    %v327 = vld [vmem:[#allocation8 + $0xa8] sm:$0xff]
    %v328 = vld [vmem:[#allocation8 + $0xb0] sm:$0xff]
    %v329 = vld [vmem:[#allocation8 + $0xb8] sm:$0xff]
    %v330 = vld [vmem:[#allocation8 + $0xc0] sm:$0xff]
    %v331 = vld [vmem:[#allocation8 + $0xc8] sm:$0xff]
    %v332 = vld [vmem:[#allocation8 + $0xd0] sm:$0xff]
    %v333 = vld [vmem:[#allocation8 + $0xd8] sm:$0xff]
    %v334 = vld [vmem:[#allocation8 + $0xe0] sm:$0xff]
    %v335 = vld [vmem:[#allocation8 + $0xe8] sm:$0xff]
    %v336 = vld [vmem:[#allocation8 + $0xf0] sm:$0xff]
    %v337 = vld [vmem:[#allocation8 + $0xf8] sm:$0xff]
    %v338 = vld [vmem:[#allocation10] sm:$0x1]
    %v340 = vlaneseq
    %v341 = vshrl.u32 %v340, 7
    %v342 = vsub.s32 0, %v341
    %v343 = vrot.slane %v338, %v342
    %345 = vmatprep.subr.mxu0 0.0
    %346 = vmatpush1.msra.mxu0 %v306
    %347 = vmatprep.subr.mxu0 0.0
    %348 = vmatpush1.msra.mxu0 %v307
    %349 = vmatprep.subr.mxu0 0.0
    %350 = vmatpush1.msra.mxu0 %v308
    %351 = vmatprep.subr.mxu0 0.0
    %352 = vmatpush1.msra.mxu0 %v309
    %353 = vmatprep.subr.mxu0 0.0
    %354 = vmatpush1.msra.mxu0 %v310
    %355 = vmatprep.subr.mxu0 0.0
    %356 = vmatpush1.msra.mxu0 %v311
    %357 = vmatprep.subr.mxu0 0.0
    %358 = vmatpush1.msra.mxu0 %v312
    %359 = vmatprep.subr.mxu0 0.0
    %360 = vmatpush1.msra.mxu0 %v313
    %361 = vmatprep.subr.mxu0 0.0
    %362 = vmatpush1.msra.mxu0 %v314
    %363 = vmatprep.subr.mxu0 0.0
    %364 = vmatpush1.msra.mxu0 %v315
    %365 = vmatprep.subr.mxu0 0.0
    %366 = vmatpush1.msra.mxu0 %v316
    %367 = vmatprep.subr.mxu0 0.0
    %368 = vmatpush1.msra.mxu0 %v317
    %369 = vmatprep.subr.mxu0 0.0
    %370 = vmatpush1.msra.mxu0 %v318
    %371 = vmatprep.subr.mxu0 0.0
    %372 = vmatpush1.msra.mxu0 %v319
    %373 = vmatprep.subr.mxu0 0.0
    %374 = vmatpush1.msra.mxu0 %v320
    %375 = vmatprep.subr.mxu0 0.0
    %376 = vmatpush1.msra.mxu0 %v321
    %377 = vmatprep.subr.mxu0 0.0
    %378 = vmatpush1.msra.mxu0 %v322
    %379 = vmatprep.subr.mxu0 0.0
    %380 = vmatpush1.msra.mxu0 %v323
    %381 = vmatprep.subr.mxu0 0.0
    %382 = vmatpush1.msra.mxu0 %v324
    %383 = vmatprep.subr.mxu0 0.0
    %384 = vmatpush1.msra.mxu0 %v325
    %385 = vmatprep.subr.mxu0 0.0
    %386 = vmatpush1.msra.mxu0 %v326
    %387 = vmatprep.subr.mxu0 0.0
    %388 = vmatpush1.msra.mxu0 %v327
    %389 = vmatprep.subr.mxu0 0.0
    %390 = vmatpush1.msra.mxu0 %v328
    %391 = vmatprep.subr.mxu0 0.0
    %392 = vmatpush1.msra.mxu0 %v329
    %393 = vmatprep.subr.mxu0 0.0
    %394 = vmatpush1.msra.mxu0 %v330
    %395 = vmatprep.subr.mxu0 0.0
    %396 = vmatpush1.msra.mxu0 %v331
    %397 = vmatprep.subr.mxu0 0.0
    %398 = vmatpush1.msra.mxu0 %v332
    %399 = vmatprep.subr.mxu0 0.0
    %400 = vmatpush1.msra.mxu0 %v333
    %401 = vmatprep.subr.mxu0 0.0
    %402 = vmatpush1.msra.mxu0 %v334
    %403 = vmatprep.subr.mxu0 0.0
    %404 = vmatpush1.msra.mxu0 %v335
    %405 = vmatprep.subr.mxu0 0.0
    %406 = vmatpush1.msra.mxu0 %v336
    %407 = vmatprep.subr.mxu0 0.0
    %408 = vmatpush1.msra.mxu0 %v337
    %409 = vmatprep.mubr.f32.mxu0 %v214
    %410 = vmatmul.mubr.f32.gmra.mrb[0].mxu0 %v212
    %v411 = vpop.f32.mrb[0].mxu0
    %v412 = vadd.f32 %v343, %v411
    %v413 = vpop.f32.mrb[0].mxu0
    %414 = vmatprep.mubr.f32.mxu0 %v220
    %415 = vmatmul.mubr.f32.gmra.mrb[0].mxu0 %v218
    %v416 = vpop.f32.mrb[0].mxu0
    %v417 = vadd.f32 %v343, %v416
    %v418 = vpop.f32.mrb[0].mxu0
    %419 = vmatprep.mubr.f32.mxu0 %v226
    %420 = vmatmul.mubr.f32.gmra.mrb[0].mxu0 %v224
    %v421 = vpop.f32.mrb[0].mxu0
    %v422 = vadd.f32 %v343, %v421
    %v423 = vpop.f32.mrb[0].mxu0
    %424 = vmatprep.mubr.f32.mxu0 %v232
    %425 = vmatmul.mubr.f32.gmra.mrb[0].mxu0 %v230
    %v426 = vpop.f32.mrb[0].mxu0
    %v427 = vadd.f32 %v343, %v426
    %v428 = vpop.f32.mrb[0].mxu0
    %429 = vmatprep.mubr.f32.mxu0 %v238
    %430 = vmatmul.mubr.f32.gmra.mrb[0].mxu0 %v236
    %v431 = vpop.f32.mrb[0].mxu0
    %v432 = vadd.f32 %v343, %v431
    %v433 = vpop.f32.mrb[0].mxu0
    %434 = vmatprep.mubr.f32.mxu0 %v244
    %435 = vmatmul.mubr.f32.gmra.mrb[0].mxu0 %v242
    %v436 = vpop.f32.mrb[0].mxu0
    %v437 = vadd.f32 %v343, %v436
    %v438 = vpop.f32.mrb[0].mxu0
    %439 = vmatprep.mubr.f32.mxu0 %v250
    %440 = vmatmul.mubr.f32.gmra.mrb[0].mxu0 %v248
    %v441 = vpop.f32.mrb[0].mxu0
    %v442 = vadd.f32 %v343, %v441
    %v443 = vpop.f32.mrb[0].mxu0
    %444 = vmatprep.mubr.f32.mxu0 %v256
    %445 = vmatmul.mubr.f32.gmra.mrb[0].mxu0 %v254
    %v446 = vpop.f32.mrb[0].mxu0
    %v447 = vadd.f32 %v343, %v446
    %v448 = vpop.f32.mrb[0].mxu0
    %449 = vmatprep.mubr.f32.mxu0 %v262
    %450 = vmatmul.mubr.f32.gmra.mrb[0].mxu0 %v260
    %v451 = vpop.f32.mrb[0].mxu0
    %v452 = vadd.f32 %v343, %v451
    %v453 = vpop.f32.mrb[0].mxu0
    %454 = vmatprep.mubr.f32.mxu0 %v268
    %455 = vmatmul.mubr.f32.gmra.mrb[0].mxu0 %v266
    %v456 = vpop.f32.mrb[0].mxu0
    %v457 = vadd.f32 %v343, %v456
    %v458 = vpop.f32.mrb[0].mxu0
    %459 = vmatprep.mubr.f32.mxu0 %v274
    %460 = vmatmul.mubr.f32.gmra.mrb[0].mxu0 %v272
    %v461 = vpop.f32.mrb[0].mxu0
    %v462 = vadd.f32 %v343, %v461
    %v463 = vpop.f32.mrb[0].mxu0
    %464 = vmatprep.mubr.f32.mxu0 %v280
    %465 = vmatmul.mubr.f32.gmra.mrb[0].mxu0 %v278
    %v466 = vpop.f32.mrb[0].mxu0
    %v467 = vadd.f32 %v343, %v466
    %v468 = vpop.f32.mrb[0].mxu0
    %469 = vmatprep.mubr.f32.mxu0 %v286
    %470 = vmatmul.mubr.f32.gmra.mrb[0].mxu0 %v284
    %v471 = vpop.f32.mrb[0].mxu0
    %v472 = vadd.f32 %v343, %v471
    %v473 = vpop.f32.mrb[0].mxu0
    %474 = vmatprep.mubr.f32.mxu0 %v292
    %475 = vmatmul.mubr.f32.gmra.mrb[0].mxu0 %v290
    %v476 = vpop.f32.mrb[0].mxu0
    %v477 = vadd.f32 %v343, %v476
    %v478 = vpop.f32.mrb[0].mxu0
    %479 = vmatprep.mubr.f32.mxu0 %v298
    %480 = vmatmul.mubr.f32.gmra.mrb[0].mxu0 %v296
    %v481 = vpop.f32.mrb[0].mxu0
    %v482 = vadd.f32 %v343, %v481
    %v483 = vpop.f32.mrb[0].mxu0
    %484 = vmatprep.mubr.f32.mxu0 %v304
    %485 = vmatmul.mubr.f32.gmra.mrb[0].mxu0 %v302
    %v486 = vpop.f32.mrb[0].mxu0
    %v487 = vadd.f32 %v343, %v486
    %v488 = vpop.f32.mrb[0].mxu0
    %489 = vdwg.mxu0
    %v490 = vadd.f32 %v85, %v412
    %v491 = vadd.f32 %v86, %v417
    %v492 = vadd.f32 %v87, %v422
    %v493 = vadd.f32 %v88, %v427
    %v494 = vadd.f32 %v89, %v432
    %v495 = vadd.f32 %v90, %v437
    %v496 = vadd.f32 %v91, %v442
    %v497 = vadd.f32 %v92, %v447
    %v498 = vadd.f32 %v93, %v452
    %v499 = vadd.f32 %v94, %v457
    %v500 = vadd.f32 %v95, %v462
    %v501 = vadd.f32 %v96, %v467
    %v502 = vadd.f32 %v97, %v472
    %v503 = vadd.f32 %v98, %v477
    %v504 = vadd.f32 %v99, %v482
    %v505 = vadd.f32 %v100, %v487
    %506 = vst [vmem:[#allocation11] sm:$0xff] %v490
    %507 = vst [vmem:[#allocation11 + $0x8] sm:$0xff] %v491
    %508 = vst [vmem:[#allocation11 + $0x10] sm:$0xff] %v492
    %509 = vst [vmem:[#allocation11 + $0x18] sm:$0xff] %v493
    %510 = vst [vmem:[#allocation11 + $0x20] sm:$0xff] %v494
    %511 = vst [vmem:[#allocation11 + $0x28] sm:$0xff] %v495
    %512 = vst [vmem:[#allocation11 + $0x30] sm:$0xff] %v496
    %513 = vst [vmem:[#allocation11 + $0x38] sm:$0xff] %v497
    %514 = vst [vmem:[#allocation11 + $0x40] sm:$0xff] %v498
    %515 = vst [vmem:[#allocation11 + $0x48] sm:$0xff] %v499
    %516 = vst [vmem:[#allocation11 + $0x50] sm:$0xff] %v500
    %517 = vst [vmem:[#allocation11 + $0x58] sm:$0xff] %v501
    %518 = vst [vmem:[#allocation11 + $0x60] sm:$0xff] %v502
    %519 = vst [vmem:[#allocation11 + $0x68] sm:$0xff] %v503
    %520 = vst [vmem:[#allocation11 + $0x70] sm:$0xff] %v504
    %521 = vst [vmem:[#allocation11 + $0x78] sm:$0xff] %v505
    // Predicated region
    $region42: #{tpu_custom_call.1} parent=1 // pred_check
      _
    $region43: #{tpu_custom_call.1} parent=1 // pred_check_branch
      %523 = sbr.rel (0) target = $region45
    $region44: #{tpu_custom_call.1} parent=1 // pred_region
      %s525 = ssub.s32 2048, 2048
      %526 = vsyncadd [#allocation4], %s525
      %s527 = sshll.u32 [#allocation11], 4
      %s528 = int_to_ptr.vmem [resolvable:$true] %s527
      %533 = dma.vmem_to_hbm [thread:$0]  %s528, 2048, %s5, [#allocation4], 128, 128, 8
    $region45: #{tpu_custom_call.1} parent=1 // pred_fallthru
      _
    // Predicated region
    $region46: #{tpu_custom_call.1} parent=1 // pred_check
      _
    $region47: #{tpu_custom_call.1} parent=1 // pred_check_branch
      %535 = sbr.rel (0) target = $region49
    $region48: #{tpu_custom_call.1} parent=1 // pred_region
      %536 = dma.done [#allocation4], 2048
    $region49: #{tpu_custom_call.1} parent=1 // pred_fallthru
      _
    %537 = vsyncpa [#allocation3], 1
    %538 = vsyncpa [#allocation6], 1
    %539 = vsyncpa [#allocation9], 1
    %540 = vsyncpa [#allocation4], 1

// kernel: tpu_custom_call.1
$region0: #{tpu_custom_call.1}
  #allocation0 [shape = 'u32[]', space=smem, size = 0x4, offset = 0x4, fixed_abs, tag = 'smem constant byte address 0x4 - core index']
  #allocation1 [shape = 'u32[144,128]{1,0:T(1,128)}', space=vmem, size = 0x12000, scoped, tag = 'internal scratch']
  %s0 = inlined_call_operand.hbm [shape: f32[128,128], index: 0, kind: input, shape index: {}]
  %s1 = inlined_call_operand.hbm [shape: f32[128,256], index: 1, kind: input, shape index: {}]
  %s2 = inlined_call_operand.hbm [shape: f32[1,256], index: 2, kind: input, shape index: {}]
  %s3 = inlined_call_operand.hbm [shape: f32[256,128], index: 3, kind: input, shape index: {}]
  %s4 = inlined_call_operand.hbm [shape: f32[1,128], index: 4, kind: input, shape index: {}]
  %s5 = inlined_call_operand.hbm [shape: f32[128,128], index: 5, kind: output, shape index: {}]
  %s6 = sld [smem:[#allocation0]]
  $region50: #{tpu_custom_call.1} parent=0
    _
  %s8 = ssub.s32 1, %s6
  %s9 = scalar_select 0, %s8, %s6
  $region1: #{tpu_custom_call.1} parent=0
    #allocation2 [shape = 'u8[65536]{0}', space=vmem, size = 0x10000, scoped, tag = 'input window, operand 0, single buffered']
    #allocation3 [shape = 's32[1]{0}', space=sflag, size = 0x4, scoped, tag = 'scoped memory for tpu_custom_call.1']
    #allocation4 [shape = 's32[1]{0}', space=sflag, size = 0x4, scoped, tag = 'scoped memory for tpu_custom_call.1']
    #allocation5 [shape = 'u8[131072]{0}', space=vmem, size = 0x20000, scoped, tag = 'input window, operand 1, single buffered']
    #allocation6 [shape = 's32[1]{0}', space=sflag, size = 0x4, scoped, tag = 'scoped memory for tpu_custom_call.1']
    #allocation7 [shape = 'u8[1024]{0}', space=vmem, size = 0x400, scoped, tag = 'input window, operand 2, single buffered']
    #allocation8 [shape = 'u8[131072]{0}', space=vmem, size = 0x20000, scoped, tag = 'input window, operand 3, single buffered']
    #allocation9 [shape = 's32[1]{0}', space=sflag, size = 0x4, scoped, tag = 'scoped memory for tpu_custom_call.1']
    #allocation10 [shape = 'u8[512]{0}', space=vmem, size = 0x400, scoped, tag = 'input window, operand 4, single buffered']
    #allocation11 [shape = 'u8[65536]{0}', space=vmem, size = 0x10000, scoped, tag = 'output window, operand 0, single buffered']
    %10 = vsyncpa [#allocation3], 0
    %11 = vsyncpa [#allocation6], 0
    %12 = vsyncpa [#allocation9], 0
    %13 = vsyncpa [#allocation4], 0
    // Predicated region
    $region2: #{tpu_custom_call.1} parent=1 // pred_check
      _
    $region3: #{tpu_custom_call.1} parent=1 // pred_check_branch
      %15 = sbr.rel (0) target = $region5
    $region4: #{tpu_custom_call.1} parent=1 // pred_region
      %s17 = ssub.s32 2048, 2048
      %18 = vsyncadd [#allocation3], %s17
      %s19 = sshll.u32 [#allocation2], 4
      %s20 = int_to_ptr.vmem [resolvable:$true] %s19
      %25 = dma.hbm_to_vmem [thread:$0]  %s0, 2048, %s20, [#allocation3], 128, 128, 8
    $region5: #{tpu_custom_call.1} parent=1 // pred_fallthru
      _
    // Predicated region
    $region6: #{tpu_custom_call.1} parent=1 // pred_check
      _
    $region7: #{tpu_custom_call.1} parent=1 // pred_check_branch
      %27 = sbr.rel (0) target = $region9
    $region8: #{tpu_custom_call.1} parent=1 // pred_region
      %s29 = ssub.s32 4096, 4096
      %30 = vsyncadd [#allocation6], %s29
      %s31 = sshll.u32 [#allocation5], 4
      %s32 = int_to_ptr.vmem [resolvable:$true] %s31
      %37 = dma.hbm_to_vmem [thread:$0]  %s1, 4096, %s32, [#allocation6], 256, 256, 16
    $region9: #{tpu_custom_call.1} parent=1 // pred_fallthru
      _
    // Predicated region
    $region10: #{tpu_custom_call.1} parent=1 // pred_check
      _
    $region11: #{tpu_custom_call.1} parent=1 // pred_check_branch
      %39 = sbr.rel (0) target = $region13
    $region12: #{tpu_custom_call.1} parent=1 // pred_region
      %s41 = ssub.s32 32, 32
      %42 = vsyncadd [#allocation6], %s41
      %s44 = sshll.u32 [#allocation7], 4
      %s45 = int_to_ptr.vmem [resolvable:$true] %s44
      %47 = dma.hbm_to_vmem [thread:$0]  %s2, 32, %s45, [#allocation6]
    $region13: #{tpu_custom_call.1} parent=1 // pred_fallthru
      _
    // Predicated region
    $region14: #{tpu_custom_call.1} parent=1 // pred_check
      _
    $region15: #{tpu_custom_call.1} parent=1 // pred_check_branch
      %49 = sbr.rel (0) target = $region17
    $region16: #{tpu_custom_call.1} parent=1 // pred_region
      %s51 = ssub.s32 4096, 4096
      %52 = vsyncadd [#allocation9], %s51
      %s53 = sshll.u32 [#allocation8], 4
      %s54 = int_to_ptr.vmem [resolvable:$true] %s53
      %59 = dma.hbm_to_vmem [thread:$0]  %s3, 4096, %s54, [#allocation9], 128, 128, 8
    $region17: #{tpu_custom_call.1} parent=1 // pred_fallthru
      _
    // Predicated region
    $region18: #{tpu_custom_call.1} parent=1 // pred_check
      _
    $region19: #{tpu_custom_call.1} parent=1 // pred_check_branch
      %61 = sbr.rel (0) target = $region21
    $region20: #{tpu_custom_call.1} parent=1 // pred_region
      %s63 = ssub.s32 16, 16
      %64 = vsyncadd [#allocation9], %s63
      %s66 = sshll.u32 [#allocation10], 4
      %s67 = int_to_ptr.vmem [resolvable:$true] %s66
      %69 = dma.hbm_to_vmem [thread:$0]  %s4, 16, %s67, [#allocation9]
    $region21: #{tpu_custom_call.1} parent=1 // pred_fallthru
      _
    // Predicated region
    $region22: #{tpu_custom_call.1} parent=1 // pred_check
      _
    $region23: #{tpu_custom_call.1} parent=1 // pred_check_branch
      %71 = sbr.rel (0) target = $region25
    $region24: #{tpu_custom_call.1} parent=1 // pred_region
      %72 = dma.done [#allocation3], 2048
    $region25: #{tpu_custom_call.1} parent=1 // pred_fallthru
      _
    // Predicated region
    $region26: #{tpu_custom_call.1} parent=1 // pred_check
      _
    $region27: #{tpu_custom_call.1} parent=1 // pred_check_branch
      %74 = sbr.rel (0) target = $region29
    $region28: #{tpu_custom_call.1} parent=1 // pred_region
      %75 = dma.done [#allocation6], 4096
    $region29: #{tpu_custom_call.1} parent=1 // pred_fallthru
      _
    // Predicated region
    $region30: #{tpu_custom_call.1} parent=1 // pred_check
      _
    $region31: #{tpu_custom_call.1} parent=1 // pred_check_branch
      %77 = sbr.rel (0) target = $region33
    $region32: #{tpu_custom_call.1} parent=1 // pred_region
      %78 = dma.done [#allocation6], 32
    $region33: #{tpu_custom_call.1} parent=1 // pred_fallthru
      _
    // Predicated region
    $region34: #{tpu_custom_call.1} parent=1 // pred_check
      _
    $region35: #{tpu_custom_call.1} parent=1 // pred_check_branch
      %80 = sbr.rel (0) target = $region37
    $region36: #{tpu_custom_call.1} parent=1 // pred_region
      %81 = dma.done [#allocation9], 4096
    $region37: #{tpu_custom_call.1} parent=1 // pred_fallthru
      _
    // Predicated region
    $region38: #{tpu_custom_call.1} parent=1 // pred_check
      _
    $region39: #{tpu_custom_call.1} parent=1 // pred_check_branch
      %83 = sbr.rel (0) target = $region41
    $region40: #{tpu_custom_call.1} parent=1 // pred_region
      %84 = dma.done [#allocation9], 16
    $region41: #{tpu_custom_call.1} parent=1 // pred_fallthru
      _
    %v85 = vld [vmem:[#allocation2] sm:$0xff]
    %v86 = vld [vmem:[#allocation2 + $0x8] sm:$0xff]
    %v87 = vld [vmem:[#allocation2 + $0x10] sm:$0xff]
    %v88 = vld [vmem:[#allocation2 + $0x18] sm:$0xff]
    %v89 = vld [vmem:[#allocation2 + $0x20] sm:$0xff]
    %v90 = vld [vmem:[#allocation2 + $0x28] sm:$0xff]
    %v91 = vld [vmem:[#allocation2 + $0x30] sm:$0xff]
    %v92 = vld [vmem:[#allocation2 + $0x38] sm:$0xff]
    %v93 = vld [vmem:[#allocation2 + $0x40] sm:$0xff]
    %v94 = vld [vmem:[#allocation2 + $0x48] sm:$0xff]
    %v95 = vld [vmem:[#allocation2 + $0x50] sm:$0xff]
    %v96 = vld [vmem:[#allocation2 + $0x58] sm:$0xff]
    %v97 = vld [vmem:[#allocation2 + $0x60] sm:$0xff]
    %v98 = vld [vmem:[#allocation2 + $0x68] sm:$0xff]
    %v99 = vld [vmem:[#allocation2 + $0x70] sm:$0xff]
    %v100 = vld [vmem:[#allocation2 + $0x78] sm:$0xff]
    %v101 = vld [vmem:[#allocation5] sm:$0xff]
    %v102 = vld [vmem:[#allocation5 + $0x8] sm:$0xff]
    %v103 = vld [vmem:[#allocation5 + $0x10] sm:$0xff]
    %v104 = vld [vmem:[#allocation5 + $0x18] sm:$0xff]
    %v105 = vld [vmem:[#allocation5 + $0x20] sm:$0xff]
    %v106 = vld [vmem:[#allocation5 + $0x28] sm:$0xff]
    %v107 = vld [vmem:[#allocation5 + $0x30] sm:$0xff]
    %v108 = vld [vmem:[#allocation5 + $0x38] sm:$0xff]
    %v109 = vld [vmem:[#allocation5 + $0x40] sm:$0xff]
    %v110 = vld [vmem:[#allocation5 + $0x48] sm:$0xff]
    %v111 = vld [vmem:[#allocation5 + $0x50] sm:$0xff]
    %v112 = vld [vmem:[#allocation5 + $0x58] sm:$0xff]
    %v113 = vld [vmem:[#allocation5 + $0x60] sm:$0xff]
    %v114 = vld [vmem:[#allocation5 + $0x68] sm:$0xff]
    %v115 = vld [vmem:[#allocation5 + $0x70] sm:$0xff]
    %v116 = vld [vmem:[#allocation5 + $0x78] sm:$0xff]
    %v117 = vld [vmem:[#allocation5 + $0x80] sm:$0xff]
    %v118 = vld [vmem:[#allocation5 + $0x88] sm:$0xff]
    %v119 = vld [vmem:[#allocation5 + $0x90] sm:$0xff]
    %v120 = vld [vmem:[#allocation5 + $0x98] sm:$0xff]
    %v121 = vld [vmem:[#allocation5 + $0xa0] sm:$0xff]
    %v122 = vld [vmem:[#allocation5 + $0xa8] sm:$0xff]
    %v123 = vld [vmem:[#allocation5 + $0xb0] sm:$0xff]
    %v124 = vld [vmem:[#allocation5 + $0xb8] sm:$0xff]
    %v125 = vld [vmem:[#allocation5 + $0xc0] sm:$0xff]
    %v126 = vld [vmem:[#allocation5 + $0xc8] sm:$0xff]
    %v127 = vld [vmem:[#allocation5 + $0xd0] sm:$0xff]
    %v128 = vld [vmem:[#allocation5 + $0xd8] sm:$0xff]
    %v129 = vld [vmem:[#allocation5 + $0xe0] sm:$0xff]
    %v130 = vld [vmem:[#allocation5 + $0xe8] sm:$0xff]
    %v131 = vld [vmem:[#allocation5 + $0xf0] sm:$0xff]
    %v132 = vld [vmem:[#allocation5 + $0xf8] sm:$0xff]
    %v133 = vld [vmem:[#allocation7] sm:$0x3]
    %v135 = vlaneseq
    %v136 = vshrl.u32 %v135, 7
    %v137 = vsub.s32 0, %v136
    %v138 = vrot.slane %v133, %v137
    %v139 = vlaneseq
    %v140 = vshrl.u32 %v139, 7
    %v141 = vsub.s32 1, %v140
    %v142 = vrot.slane %v133, %v141
    %145 = vmatprep.subr.mxu0 %v102
    %146 = vmatpush1.msra.mxu0 %v101
    %147 = vmatprep.subr.mxu0 %v104
    %148 = vmatpush1.msra.mxu0 %v103
    %149 = vmatprep.subr.mxu0 %v106
    %150 = vmatpush1.msra.mxu0 %v105
    %151 = vmatprep.subr.mxu0 %v108
    %152 = vmatpush1.msra.mxu0 %v107
    %153 = vmatprep.subr.mxu0 %v110
    %154 = vmatpush1.msra.mxu0 %v109
    %155 = vmatprep.subr.mxu0 %v112
    %156 = vmatpush1.msra.mxu0 %v111
    %157 = vmatprep.subr.mxu0 %v114
    %158 = vmatpush1.msra.mxu0 %v113
    %159 = vmatprep.subr.mxu0 %v116
    %160 = vmatpush1.msra.mxu0 %v115
    %161 = vmatprep.subr.mxu0 %v118
    %162 = vmatpush1.msra.mxu0 %v117
    %163 = vmatprep.subr.mxu0 %v120
    %164 = vmatpush1.msra.mxu0 %v119
    %165 = vmatprep.subr.mxu0 %v122
    %166 = vmatpush1.msra.mxu0 %v121
    %167 = vmatprep.subr.mxu0 %v124
    %168 = vmatpush1.msra.mxu0 %v123
    %169 = vmatprep.subr.mxu0 %v126
    %170 = vmatpush1.msra.mxu0 %v125
    %171 = vmatprep.subr.mxu0 %v128
    %172 = vmatpush1.msra.mxu0 %v127
    %173 = vmatprep.subr.mxu0 %v130
    %174 = vmatpush1.msra.mxu0 %v129
    %175 = vmatprep.subr.mxu0 %v132
    %176 = vmatpush1.msra.mxu0 %v131
    %177 = vmatprep.subr.mxu0 0.0
    %178 = vmatpush1.msra.mxu0 0.0
    %179 = vmatprep.subr.mxu0 0.0
    %180 = vmatpush1.msra.mxu0 0.0
    %181 = vmatprep.subr.mxu0 0.0
    %182 = vmatpush1.msra.mxu0 0.0
    %183 = vmatprep.subr.mxu0 0.0
    %184 = vmatpush1.msra.mxu0 0.0
    %185 = vmatprep.subr.mxu0 0.0
    %186 = vmatpush1.msra.mxu0 0.0
    %187 = vmatprep.subr.mxu0 0.0
    %188 = vmatpush1.msra.mxu0 0.0
    %189 = vmatprep.subr.mxu0 0.0
    %190 = vmatpush1.msra.mxu0 0.0
    %191 = vmatprep.subr.mxu0 0.0
    %192 = vmatpush1.msra.mxu0 0.0
    %193 = vmatprep.subr.mxu0 0.0
    %194 = vmatpush1.msra.mxu0 0.0
    %195 = vmatprep.subr.mxu0 0.0
    %196 = vmatpush1.msra.mxu0 0.0
    %197 = vmatprep.subr.mxu0 0.0
    %198 = vmatpush1.msra.mxu0 0.0
    %199 = vmatprep.subr.mxu0 0.0
    %200 = vmatpush1.msra.mxu0 0.0
    %201 = vmatprep.subr.mxu0 0.0
    %202 = vmatpush1.msra.mxu0 0.0
    %203 = vmatprep.subr.mxu0 0.0
    %204 = vmatpush1.msra.mxu0 0.0
    %205 = vmatprep.subr.mxu0 0.0
    %206 = vmatpush1.msra.mxu0 0.0
    %207 = vmatprep.subr.mxu0 0.0
    %208 = vmatpush1.msra.mxu0 0.0
    %209 = vmatprep.mubr.f32.mxu0 0.0
    %210 = vmatmul.mubr.f32.gmra.mrb[0].mxu0 %v85
    %v211 = vpop.f32.mrb[0].mxu0
    %v212 = vadd.f32 %v138, %v211
    %v213 = vpop.f32.mrb[0].mxu0
    %v214 = vadd.f32 %v142, %v213
    %215 = vmatprep.mubr.f32.mxu0 0.0
    %216 = vmatmul.mubr.f32.gmra.mrb[0].mxu0 %v86
    %v217 = vpop.f32.mrb[0].mxu0
    %v218 = vadd.f32 %v138, %v217
    %v219 = vpop.f32.mrb[0].mxu0
    %v220 = vadd.f32 %v142, %v219
    %221 = vmatprep.mubr.f32.mxu0 0.0
    %222 = vmatmul.mubr.f32.gmra.mrb[0].mxu0 %v87
    %v223 = vpop.f32.mrb[0].mxu0
    %v224 = vadd.f32 %v138, %v223
    %v225 = vpop.f32.mrb[0].mxu0
    %v226 = vadd.f32 %v142, %v225
    %227 = vmatprep.mubr.f32.mxu0 0.0
    %228 = vmatmul.mubr.f32.gmra.mrb[0].mxu0 %v88
    %v229 = vpop.f32.mrb[0].mxu0
    %v230 = vadd.f32 %v138, %v229
    %v231 = vpop.f32.mrb[0].mxu0
    %v232 = vadd.f32 %v142, %v231
    %233 = vmatprep.mubr.f32.mxu0 0.0
    %234 = vmatmul.mubr.f32.gmra.mrb[0].mxu0 %v89
    %v235 = vpop.f32.mrb[0].mxu0
    %v236 = vadd.f32 %v138, %v235
    %v237 = vpop.f32.mrb[0].mxu0
    %v238 = vadd.f32 %v142, %v237
    %239 = vmatprep.mubr.f32.mxu0 0.0
    %240 = vmatmul.mubr.f32.gmra.mrb[0].mxu0 %v90
    %v241 = vpop.f32.mrb[0].mxu0
    %v242 = vadd.f32 %v138, %v241
    %v243 = vpop.f32.mrb[0].mxu0
    %v244 = vadd.f32 %v142, %v243
    %245 = vmatprep.mubr.f32.mxu0 0.0
    %246 = vmatmul.mubr.f32.gmra.mrb[0].mxu0 %v91
    %v247 = vpop.f32.mrb[0].mxu0
    %v248 = vadd.f32 %v138, %v247
    %v249 = vpop.f32.mrb[0].mxu0
    %v250 = vadd.f32 %v142, %v249
    %251 = vmatprep.mubr.f32.mxu0 0.0
    %252 = vmatmul.mubr.f32.gmra.mrb[0].mxu0 %v92
    %v253 = vpop.f32.mrb[0].mxu0
    %v254 = vadd.f32 %v138, %v253
    %v255 = vpop.f32.mrb[0].mxu0
    %v256 = vadd.f32 %v142, %v255
    %257 = vmatprep.mubr.f32.mxu0 0.0
    %258 = vmatmul.mubr.f32.gmra.mrb[0].mxu0 %v93
    %v259 = vpop.f32.mrb[0].mxu0
    %v260 = vadd.f32 %v138, %v259
    %v261 = vpop.f32.mrb[0].mxu0
    %v262 = vadd.f32 %v142, %v261
    %263 = vmatprep.mubr.f32.mxu0 0.0
    %264 = vmatmul.mubr.f32.gmra.mrb[0].mxu0 %v94
    %v265 = vpop.f32.mrb[0].mxu0
    %v266 = vadd.f32 %v138, %v265
    %v267 = vpop.f32.mrb[0].mxu0
    %v268 = vadd.f32 %v142, %v267
    %269 = vmatprep.mubr.f32.mxu0 0.0
    %270 = vmatmul.mubr.f32.gmra.mrb[0].mxu0 %v95
    %v271 = vpop.f32.mrb[0].mxu0
    %v272 = vadd.f32 %v138, %v271
    %v273 = vpop.f32.mrb[0].mxu0
    %v274 = vadd.f32 %v142, %v273
    %275 = vmatprep.mubr.f32.mxu0 0.0
    %276 = vmatmul.mubr.f32.gmra.mrb[0].mxu0 %v96
    %v277 = vpop.f32.mrb[0].mxu0
    %v278 = vadd.f32 %v138, %v277
    %v279 = vpop.f32.mrb[0].mxu0
    %v280 = vadd.f32 %v142, %v279
    %281 = vmatprep.mubr.f32.mxu0 0.0
    %282 = vmatmul.mubr.f32.gmra.mrb[0].mxu0 %v97
    %v283 = vpop.f32.mrb[0].mxu0
    %v284 = vadd.f32 %v138, %v283
    %v285 = vpop.f32.mrb[0].mxu0
    %v286 = vadd.f32 %v142, %v285
    %287 = vmatprep.mubr.f32.mxu0 0.0
    %288 = vmatmul.mubr.f32.gmra.mrb[0].mxu0 %v98
    %v289 = vpop.f32.mrb[0].mxu0
    %v290 = vadd.f32 %v138, %v289
    %v291 = vpop.f32.mrb[0].mxu0
    %v292 = vadd.f32 %v142, %v291
    %293 = vmatprep.mubr.f32.mxu0 0.0
    %294 = vmatmul.mubr.f32.gmra.mrb[0].mxu0 %v99
    %v295 = vpop.f32.mrb[0].mxu0
    %v296 = vadd.f32 %v138, %v295
    %v297 = vpop.f32.mrb[0].mxu0
    %v298 = vadd.f32 %v142, %v297
    %299 = vmatprep.mubr.f32.mxu0 0.0
    %300 = vmatmul.mubr.f32.gmra.mrb[0].mxu0 %v100
    %v301 = vpop.f32.mrb[0].mxu0
    %v302 = vadd.f32 %v138, %v301
    %v303 = vpop.f32.mrb[0].mxu0
    %v304 = vadd.f32 %v142, %v303
    %305 = vdwg.mxu0
    %v306 = vld [vmem:[#allocation8] sm:$0xff]
    %v307 = vld [vmem:[#allocation8 + $0x8] sm:$0xff]
    %v308 = vld [vmem:[#allocation8 + $0x10] sm:$0xff]
    %v309 = vld [vmem:[#allocation8 + $0x18] sm:$0xff]
    %v310 = vld [vmem:[#allocation8 + $0x20] sm:$0xff]
    %v311 = vld [vmem:[#allocation8 + $0x28] sm:$0xff]
    %v312 = vld [vmem:[#allocation8 + $0x30] sm:$0xff]
    %v313 = vld [vmem:[#allocation8 + $0x38] sm:$0xff]
    %v314 = vld [vmem:[#allocation8 + $0x40] sm:$0xff]
    %v315 = vld [vmem:[#allocation8 + $0x48] sm:$0xff]
    %v316 = vld [vmem:[#allocation8 + $0x50] sm:$0xff]
    %v317 = vld [vmem:[#allocation8 + $0x58] sm:$0xff]
    %v318 = vld [vmem:[#allocation8 + $0x60] sm:$0xff]
    %v319 = vld [vmem:[#allocation8 + $0x68] sm:$0xff]
    %v320 = vld [vmem:[#allocation8 + $0x70] sm:$0xff]
    %v321 = vld [vmem:[#allocation8 + $0x78] sm:$0xff]
    %v322 = vld [vmem:[#allocation8 + $0x80] sm:$0xff]
    %v323 = vld [vmem:[#allocation8 + $0x88] sm:$0xff]
    %v324 = vld [vmem:[#allocation8 + $0x90] sm:$0xff]
    %v325 = vld [vmem:[#allocation8 + $0x98] sm:$0xff]
    %v326 = vld [vmem:[#allocation8 + $0xa0] sm:$0xff]
    %v327 = vld [vmem:[#allocation8 + $0xa8] sm:$0xff]
    %v328 = vld [vmem:[#allocation8 + $0xb0] sm:$0xff]
    %v329 = vld [vmem:[#allocation8 + $0xb8] sm:$0xff]
    %v330 = vld [vmem:[#allocation8 + $0xc0] sm:$0xff]
    %v331 = vld [vmem:[#allocation8 + $0xc8] sm:$0xff]
    %v332 = vld [vmem:[#allocation8 + $0xd0] sm:$0xff]
    %v333 = vld [vmem:[#allocation8 + $0xd8] sm:$0xff]
    %v334 = vld [vmem:[#allocation8 + $0xe0] sm:$0xff]
    %v335 = vld [vmem:[#allocation8 + $0xe8] sm:$0xff]
    %v336 = vld [vmem:[#allocation8 + $0xf0] sm:$0xff]
    %v337 = vld [vmem:[#allocation8 + $0xf8] sm:$0xff]
    %v338 = vld [vmem:[#allocation10] sm:$0x1]
    %v340 = vlaneseq
    %v341 = vshrl.u32 %v340, 7
    %v342 = vsub.s32 0, %v341
    %v343 = vrot.slane %v338, %v342
    %345 = vmatprep.subr.mxu0 0.0
    %346 = vmatpush1.msra.mxu0 %v306
    %347 = vmatprep.subr.mxu0 0.0
    %348 = vmatpush1.msra.mxu0 %v307
    %349 = vmatprep.subr.mxu0 0.0
    %350 = vmatpush1.msra.mxu0 %v308
    %351 = vmatprep.subr.mxu0 0.0
    %352 = vmatpush1.msra.mxu0 %v309
    %353 = vmatprep.subr.mxu0 0.0
    %354 = vmatpush1.msra.mxu0 %v310
    %355 = vmatprep.subr.mxu0 0.0
    %356 = vmatpush1.msra.mxu0 %v311
    %357 = vmatprep.subr.mxu0 0.0
    %358 = vmatpush1.msra.mxu0 %v312
    %359 = vmatprep.subr.mxu0 0.0
    %360 = vmatpush1.msra.mxu0 %v313
    %361 = vmatprep.subr.mxu0 0.0
    %362 = vmatpush1.msra.mxu0 %v314
    %363 = vmatprep.subr.mxu0 0.0
    %364 = vmatpush1.msra.mxu0 %v315
    %365 = vmatprep.subr.mxu0 0.0
    %366 = vmatpush1.msra.mxu0 %v316
    %367 = vmatprep.subr.mxu0 0.0
    %368 = vmatpush1.msra.mxu0 %v317
    %369 = vmatprep.subr.mxu0 0.0
    %370 = vmatpush1.msra.mxu0 %v318
    %371 = vmatprep.subr.mxu0 0.0
    %372 = vmatpush1.msra.mxu0 %v319
    %373 = vmatprep.subr.mxu0 0.0
    %374 = vmatpush1.msra.mxu0 %v320
    %375 = vmatprep.subr.mxu0 0.0
    %376 = vmatpush1.msra.mxu0 %v321
    %377 = vmatprep.subr.mxu0 0.0
    %378 = vmatpush1.msra.mxu0 %v322
    %379 = vmatprep.subr.mxu0 0.0
    %380 = vmatpush1.msra.mxu0 %v323
    %381 = vmatprep.subr.mxu0 0.0
    %382 = vmatpush1.msra.mxu0 %v324
    %383 = vmatprep.subr.mxu0 0.0
    %384 = vmatpush1.msra.mxu0 %v325
    %385 = vmatprep.subr.mxu0 0.0
    %386 = vmatpush1.msra.mxu0 %v326
    %387 = vmatprep.subr.mxu0 0.0
    %388 = vmatpush1.msra.mxu0 %v327
    %389 = vmatprep.subr.mxu0 0.0
    %390 = vmatpush1.msra.mxu0 %v328
    %391 = vmatprep.subr.mxu0 0.0
    %392 = vmatpush1.msra.mxu0 %v329
    %393 = vmatprep.subr.mxu0 0.0
    %394 = vmatpush1.msra.mxu0 %v330
    %395 = vmatprep.subr.mxu0 0.0
    %396 = vmatpush1.msra.mxu0 %v331
    %397 = vmatprep.subr.mxu0 0.0
    %398 = vmatpush1.msra.mxu0 %v332
    %399 = vmatprep.subr.mxu0 0.0
    %400 = vmatpush1.msra.mxu0 %v333
    %401 = vmatprep.subr.mxu0 0.0
    %402 = vmatpush1.msra.mxu0 %v334
    %403 = vmatprep.subr.mxu0 0.0
    %404 = vmatpush1.msra.mxu0 %v335
    %405 = vmatprep.subr.mxu0 0.0
    %406 = vmatpush1.msra.mxu0 %v336
    %407 = vmatprep.subr.mxu0 0.0
    %408 = vmatpush1.msra.mxu0 %v337
    %409 = vmatprep.mubr.f32.mxu0 %v214
    %410 = vmatmul.mubr.f32.gmra.mrb[0].mxu0 %v212
    %v411 = vpop.f32.mrb[0].mxu0
    %v412 = vadd.f32 %v343, %v411
    %v413 = vpop.f32.mrb[0].mxu0
    %414 = vmatprep.mubr.f32.mxu0 %v220
    %415 = vmatmul.mubr.f32.gmra.mrb[0].mxu0 %v218
    %v416 = vpop.f32.mrb[0].mxu0
    %v417 = vadd.f32 %v343, %v416
    %v418 = vpop.f32.mrb[0].mxu0
    %419 = vmatprep.mubr.f32.mxu0 %v226
    %420 = vmatmul.mubr.f32.gmra.mrb[0].mxu0 %v224
    %v421 = vpop.f32.mrb[0].mxu0
    %v422 = vadd.f32 %v343, %v421
    %v423 = vpop.f32.mrb[0].mxu0
    %424 = vmatprep.mubr.f32.mxu0 %v232
    %425 = vmatmul.mubr.f32.gmra.mrb[0].mxu0 %v230
    %v426 = vpop.f32.mrb[0].mxu0
    %v427 = vadd.f32 %v343, %v426
    %v428 = vpop.f32.mrb[0].mxu0
    %429 = vmatprep.mubr.f32.mxu0 %v238
    %430 = vmatmul.mubr.f32.gmra.mrb[0].mxu0 %v236
    %v431 = vpop.f32.mrb[0].mxu0
    %v432 = vadd.f32 %v343, %v431
    %v433 = vpop.f32.mrb[0].mxu0
    %434 = vmatprep.mubr.f32.mxu0 %v244
    %435 = vmatmul.mubr.f32.gmra.mrb[0].mxu0 %v242
    %v436 = vpop.f32.mrb[0].mxu0
    %v437 = vadd.f32 %v343, %v436
    %v438 = vpop.f32.mrb[0].mxu0
    %439 = vmatprep.mubr.f32.mxu0 %v250
    %440 = vmatmul.mubr.f32.gmra.mrb[0].mxu0 %v248
    %v441 = vpop.f32.mrb[0].mxu0
    %v442 = vadd.f32 %v343, %v441
    %v443 = vpop.f32.mrb[0].mxu0
    %444 = vmatprep.mubr.f32.mxu0 %v256
    %445 = vmatmul.mubr.f32.gmra.mrb[0].mxu0 %v254
    %v446 = vpop.f32.mrb[0].mxu0
    %v447 = vadd.f32 %v343, %v446
    %v448 = vpop.f32.mrb[0].mxu0
    %449 = vmatprep.mubr.f32.mxu0 %v262
    %450 = vmatmul.mubr.f32.gmra.mrb[0].mxu0 %v260
    %v451 = vpop.f32.mrb[0].mxu0
    %v452 = vadd.f32 %v343, %v451
    %v453 = vpop.f32.mrb[0].mxu0
    %454 = vmatprep.mubr.f32.mxu0 %v268
    %455 = vmatmul.mubr.f32.gmra.mrb[0].mxu0 %v266
    %v456 = vpop.f32.mrb[0].mxu0
    %v457 = vadd.f32 %v343, %v456
    %v458 = vpop.f32.mrb[0].mxu0
    %459 = vmatprep.mubr.f32.mxu0 %v274
    %460 = vmatmul.mubr.f32.gmra.mrb[0].mxu0 %v272
    %v461 = vpop.f32.mrb[0].mxu0
    %v462 = vadd.f32 %v343, %v461
    %v463 = vpop.f32.mrb[0].mxu0
    %464 = vmatprep.mubr.f32.mxu0 %v280
    %465 = vmatmul.mubr.f32.gmra.mrb[0].mxu0 %v278
    %v466 = vpop.f32.mrb[0].mxu0
    %v467 = vadd.f32 %v343, %v466
    %v468 = vpop.f32.mrb[0].mxu0
    %469 = vmatprep.mubr.f32.mxu0 %v286
    %470 = vmatmul.mubr.f32.gmra.mrb[0].mxu0 %v284
    %v471 = vpop.f32.mrb[0].mxu0
    %v472 = vadd.f32 %v343, %v471
    %v473 = vpop.f32.mrb[0].mxu0
    %474 = vmatprep.mubr.f32.mxu0 %v292
    %475 = vmatmul.mubr.f32.gmra.mrb[0].mxu0 %v290
    %v476 = vpop.f32.mrb[0].mxu0
    %v477 = vadd.f32 %v343, %v476
    %v478 = vpop.f32.mrb[0].mxu0
    %479 = vmatprep.mubr.f32.mxu0 %v298
    %480 = vmatmul.mubr.f32.gmra.mrb[0].mxu0 %v296
    %v481 = vpop.f32.mrb[0].mxu0
    %v482 = vadd.f32 %v343, %v481
    %v483 = vpop.f32.mrb[0].mxu0
    %484 = vmatprep.mubr.f32.mxu0 %v304
    %485 = vmatmul.mubr.f32.gmra.mrb[0].mxu0 %v302
    %v486 = vpop.f32.mrb[0].mxu0
    %v487 = vadd.f32 %v343, %v486
    %v488 = vpop.f32.mrb[0].mxu0
    %489 = vdwg.mxu0
    %v490 = vadd.f32 %v85, %v412
    %v491 = vadd.f32 %v86, %v417
    %v492 = vadd.f32 %v87, %v422
    %v493 = vadd.f32 %v88, %v427
    %v494 = vadd.f32 %v89, %v432
    %v495 = vadd.f32 %v90, %v437
    %v496 = vadd.f32 %v91, %v442
    %v497 = vadd.f32 %v92, %v447
    %v498 = vadd.f32 %v93, %v452
    %v499 = vadd.f32 %v94, %v457
    %v500 = vadd.f32 %v95, %v462
    %v501 = vadd.f32 %v96, %v467
    %v502 = vadd.f32 %v97, %v472
    %v503 = vadd.f32 %v98, %v477
    %v504 = vadd.f32 %v99, %v482
    %v505 = vadd.f32 %v100, %v487
    %506 = vst [vmem:[#allocation11] sm:$0xff] %v490
    %507 = vst [vmem:[#allocation11 + $0x8] sm:$0xff] %v491
    %508 = vst [vmem:[#allocation11 + $0x10] sm:$0xff] %v492
    %509 = vst [vmem:[#allocation11 + $0x18] sm:$0xff] %v493
    %510 = vst [vmem:[#allocation11 + $0x20] sm:$0xff] %v494
    %511 = vst [vmem:[#allocation11 + $0x28] sm:$0xff] %v495
    %512 = vst [vmem:[#allocation11 + $0x30] sm:$0xff] %v496
    %513 = vst [vmem:[#allocation11 + $0x38] sm:$0xff] %v497
    %514 = vst [vmem:[#allocation11 + $0x40] sm:$0xff] %v498
    %515 = vst [vmem:[#allocation11 + $0x48] sm:$0xff] %v499
    %516 = vst [vmem:[#allocation11 + $0x50] sm:$0xff] %v500
    %517 = vst [vmem:[#allocation11 + $0x58] sm:$0xff] %v501
    %518 = vst [vmem:[#allocation11 + $0x60] sm:$0xff] %v502
    %519 = vst [vmem:[#allocation11 + $0x68] sm:$0xff] %v503
    %520 = vst [vmem:[#allocation11 + $0x70] sm:$0xff] %v504
    %521 = vst [vmem:[#allocation11 + $0x78] sm:$0xff] %v505
    // Predicated region
    $region42: #{tpu_custom_call.1} parent=1 // pred_check
      _
    $region43: #{tpu_custom_call.1} parent=1 // pred_check_branch
      %523 = sbr.rel (0) target = $region45
    $region44: #{tpu_custom_call.1} parent=1 // pred_region
      %s525 = ssub.s32 2048, 2048
      %526 = vsyncadd [#allocation4], %s525
      %s527 = sshll.u32 [#allocation11], 4
      %s528 = int_to_ptr.vmem [resolvable:$true] %s527
      %533 = dma.vmem_to_hbm [thread:$0]  %s528, 2048, %s5, [#allocation4], 128, 128, 8
    $region45: #{tpu_custom_call.1} parent=1 // pred_fallthru
      _
    // Predicated region
    $region46: #{tpu_custom_call.1} parent=1 // pred_check
      _
    $region47: #{tpu_custom_call.1} parent=1 // pred_check_branch
      %535 = sbr.rel (0) target = $region49
    $region48: #{tpu_custom_call.1} parent=1 // pred_region
      %536 = dma.done [#allocation4], 2048
    $region49: #{tpu_custom_call.1} parent=1 // pred_fallthru
      _
    %537 = vsyncpa [#allocation3], 1
    %538 = vsyncpa [#allocation6], 1
    %539 = vsyncpa [#allocation9], 1
    %540 = vsyncpa [#allocation4], 1

</llo_original>
